<compile_context>
chip_gen: v6e
topology: v6e:2x2x1
jax: 0.10.0
libtpu: 0.0.40
codegen_flags: <defaults>
</compile_context>

<pallas_src>
import jax
import jax.numpy as jnp
from jax.experimental import pallas as pl
from jax.experimental.pallas import tpu as pltpu


# Fixed problem sizes for the synthetic backbone head.
H = W = 16               # input spatial size
C0, C1, C2 = 3, 8, 16    # input / conv1,2 / conv3 channels
HP, WP = H // 2, W // 2  # after MaxPool2d(2)
_MAX_NB = 64             # images per grid step (VMEM-safe well under default scoped limit)


# ----------------------------------------------------------------------------
# Fused kernel
# ----------------------------------------------------------------------------
def _conv_row_toeplitz(x, t_ref, bias, relu):
    """3x3 'SAME' conv in lane-folded layout.

    x:     (nb, rows, Kin)  activation, lane index = c*width + w (c-major).
    t_ref: (3, Kin, Kout)   block-Toeplitz weight matrices, one per row offset;
                            column shifts and zero padding in w are baked in.
    Row padding is realized by two zero-row-shifted copies of x.
    Returns (nb, rows, Kout) float32.
    """
    nb, rows, kin = x.shape
    kout = t_ref.shape[2]
    x2 = x.reshape(nb * rows, kin)
    zero_row = jnp.zeros((nb, 1, kin), jnp.float32)
    up = jnp.concatenate([zero_row, x[:, :rows - 1, :]], axis=1).reshape(nb * rows, kin)
    dn = jnp.concatenate([x[:, 1:, :], zero_row], axis=1).reshape(nb * rows, kin)
    acc = jnp.dot(up, t_ref[0], preferred_element_type=jnp.float32)
    acc = acc + jnp.dot(x2, t_ref[1], preferred_element_type=jnp.float32)
    acc = acc + jnp.dot(dn, t_ref[2], preferred_element_type=jnp.float32)
    acc = acc + bias
    if relu:
        acc = jnp.maximum(acc, 0.0)
    return acc.reshape(nb, rows, kout)


def _fused_forward_kernel(x_ref, mean_ref, t1_ref, b1_ref, t2_ref, b2_ref,
                          t3_ref, b3_ref, o_ref):
    nb = x_ref.shape[0]
    x = x_ref[...]                                            # (nb, C0, H, W) NCHW

    # ---- NCHW -> lane-folded (nb, H, C0*W), lane = c*W + w; Normalize ----
    # (1/std is folded into the conv1 weights; only the mean shift stays here.)
    lhs = jnp.concatenate([x[:, c, :, :] for c in range(C0)], axis=-1)  # (nb,H,48)
    lhs = lhs - mean_ref[...]                                           # (1,1,48) bcast

    # ---- Conv1 (C0->C1) -> [StyleLoss identity] -> ReLU ----
    a1 = _conv_row_toeplitz(lhs, t1_ref, b1_ref[...], relu=True)        # (nb,H,128)

    # ---- Conv2 (C1->C1) -> [StyleLoss identity] -> ReLU ----
    a2 = _conv_row_toeplitz(a1, t2_ref, b2_ref[...], relu=True)         # (nb,H,128)

    # ---- MaxPool2d(2) ----
    # h direction: pairwise max over adjacent rows (sublane pairs).
    r = a2.reshape(nb, HP, 2, C1 * W)
    mh = jnp.maximum(r[:, :, 0, :], r[:, :, 1, :])                      # (nb,HP,128)
    # w direction: max of lane l with lane l+1; the even-lane results are the
    # pooled values.  The compaction (taking only even lanes) is folded into
    # conv3's Toeplitz matrices, so odd-lane junk is multiplied by zero there.
    mh_shift = jnp.concatenate([mh[:, :, 1:], mh[:, :, :1]], axis=-1)
    mw = jnp.maximum(mh, mh_shift)                                      # (nb,HP,128)

    # ---- Conv3 (C1->C2); Sequential truncated here, so no trailing ReLU ----
    # TODO(synk): ContentLoss/StyleLoss only record MSE / Gram-matrix losses as
    # side effects; they do not affect the returned tensor and are not computed.
    a3 = _conv_row_toeplitz(mw, t3_ref, b3_ref[...], relu=False)        # (nb,HP,128)

    # Lane-dense store: one full (8,128) f32 block per image, lane = c*WP + w.
    o_ref[...] = a3.astype(o_ref.dtype)


# ----------------------------------------------------------------------------
# Weight preparation (trace/prep time, outside the kernel)
# ----------------------------------------------------------------------------
def _toeplitz_rows(w, width):
    """w: (3,3,Cin,Cout) conv weight -> (3, Cin*width, Cout*width) block-Toeplitz
    matrices (one per row offset di), lane order c-major (c*width + w).
    Zero padding in the w direction is encoded as missing (zero) taps."""
    kh, kw, cin, cout = w.shape
    wi = jnp.arange(width)[:, None]           # input column
    wo = jnp.arange(width)[None, :]           # output column
    dj = wi - wo + 1                          # kernel column tap
    valid = ((dj >= 0) & (dj < kw)).astype(w.dtype)
    djc = jnp.clip(dj, 0, kw - 1)
    mats = []
    for di in range(kh):
        blk = w[di][djc]                      # (width, width, Cin, Cout)
        blk = blk * valid[:, :, None, None]
        blk = jnp.transpose(blk, (2, 0, 3, 1))        # (Cin, wi, Cout, wo)
        mats.append(blk.reshape(cin * width, cout * width))
    return jnp.stack(mats, axis=0)


def prepare_params(params):
    """Fold normalization/layout work into the weights once, outside the kernel."""
    istd = (1.0 / params["std"]).reshape(C0)
    w1s = params["w1"] * istd[None, None, :, None]        # exact: 0-padding keeps 0

    t3 = _toeplitz_rows(params["w3"], WP)                 # (3, C1*WP, C2*WP)
    # Selection matrix folding the w-direction max-pool lane compaction into conv3:
    # S[c*W + 2q, c*WP + q] = 1.
    cols = jnp.arange(C1 * WP)
    src = (cols // WP) * W + (cols % WP) * 2
    sel = jnp.zeros((C1 * W, C1 * WP), jnp.float32).at[src, cols].set(1.0)
    t3f = jnp.einsum("sk,dko->dso", sel, t3)              # (3, 128, 128)

    return {
        "mean_l": jnp.repeat(params["mean"].reshape(C0), W).reshape(1, 1, C0 * W),
        "t1": _toeplitz_rows(w1s, W),                     # (3, 48, 128)
        "b1": jnp.repeat(params["b1"], W).reshape(1, C1 * W),
        "t2": _toeplitz_rows(params["w2"], W),            # (3, 128, 128)
        "b2": jnp.repeat(params["b2"], W).reshape(1, C1 * W),
        "t3": t3f,                                        # (3, 128, 128)
        "b3": jnp.repeat(params["b3"], WP).reshape(1, C2 * WP),
    }


# ----------------------------------------------------------------------------
# Wrapper
# ----------------------------------------------------------------------------
def neural_algorithm_forward(x_nchw, prepped):
    """x_nchw: (N, 3, H, W) float32, PyTorch NCHW layout."""
    N = x_nchw.shape[0]
    nb = min(_MAX_NB, max(1, N // 2))        # keep >=2 grid steps when N>=2 (v7x 2 TCs)
    nblocks = pl.cdiv(N, nb)
    npad = nblocks * nb
    if npad != N:
        x_nchw = jnp.pad(x_nchw, ((0, npad - N), (0, 0), (0, 0), (0, 0)))

    out = pl.pallas_call(
        _fused_forward_kernel,
        out_shape=jax.ShapeDtypeStruct((npad, HP, C2 * WP), x_nchw.dtype),
        grid=(nblocks,),
        in_specs=[
            pl.BlockSpec((nb, C0, H, W), lambda n: (n, 0, 0, 0)),
            pl.BlockSpec((1, 1, C0 * W), lambda n: (0, 0, 0)),
            pl.BlockSpec((3, C0 * W, C1 * W), lambda n: (0, 0, 0)),
            pl.BlockSpec((1, C1 * W), lambda n: (0, 0)),
            pl.BlockSpec((3, C1 * W, C1 * W), lambda n: (0, 0, 0)),
            pl.BlockSpec((1, C1 * W), lambda n: (0, 0)),
            pl.BlockSpec((3, C1 * W, C2 * WP), lambda n: (0, 0, 0)),
            pl.BlockSpec((1, C2 * WP), lambda n: (0, 0)),
        ],
        out_specs=pl.BlockSpec((nb, HP, C2 * WP), lambda n: (n, 0, 0)),
        compiler_params=pltpu.CompilerParams(
            dimension_semantics=("parallel",)),           # megacore over batch blocks
    )(x_nchw, prepped["mean_l"], prepped["t1"], prepped["b1"],
      prepped["t2"], prepped["b2"], prepped["t3"], prepped["b3"])

    out = out[:N]                                          # drop batch padding
    # Kernel emits lane-dense (N, HP, C2*WP) with lane = c*WP + w; this tiny
    # (N*4KB) reshape+transpose recovers NCHW for the caller.
    return jnp.transpose(out.reshape(N, HP, C2, WP), (0, 2, 1, 3))


# ----------------------------------------------------------------------------
# Pure-JAX reference (for correctness check) and params
# ----------------------------------------------------------------------------
def _reference_forward(x_nchw, params):
    x = jnp.transpose(x_nchw, (0, 2, 3, 1))
    x = (x - params["mean"]) / params["std"]
    dn = ("NHWC", "HWIO", "NHWC")
    x = jax.lax.conv_general_dilated(x, params["w1"], (1, 1), "SAME",
                                     dimension_numbers=dn) + params["b1"]
    x = jnp.maximum(x, 0.0)
    x = jax.lax.conv_general_dilated(x, params["w2"], (1, 1), "SAME",
                                     dimension_numbers=dn) + params["b2"]
    x = jnp.maximum(x, 0.0)
    x = jax.lax.reduce_window(x, -jnp.inf, jax.lax.max,
                              (1, 2, 2, 1), (1, 2, 2, 1), "VALID")
    x = jax.lax.conv_general_dilated(x, params["w3"], (1, 1), "SAME",
                                     dimension_numbers=dn) + params["b3"]
    return jnp.transpose(x, (0, 3, 1, 2))


def make_params(key):
    k = jax.random.split(key, 6)
    scale = 0.1
    return {
        # ImageNet normalization constants from the module signature.
        "mean": jnp.array([0.485, 0.456, 0.406], jnp.float32).reshape(1, 1, 1, C0),
        "std": jnp.array([0.229, 0.224, 0.225], jnp.float32).reshape(1, 1, 1, C0),
        # Conv weights stored as (KH, KW, Cin, Cout).
        "w1": scale * jax.random.normal(k[0], (3, 3, C0, C1), jnp.float32),
        "b1": scale * jax.random.normal(k[1], (C1,), jnp.float32),
        "w2": scale * jax.random.normal(k[2], (3, 3, C1, C1), jnp.float32),
        "b2": scale * jax.random.normal(k[3], (C1,), jnp.float32),
        "w3": scale * jax.random.normal(k[4], (3, 3, C1, C2), jnp.float32),
        "b3": scale * jax.random.normal(k[5], (C2,), jnp.float32),
    }


if __name__ == "__main__":
    key = jax.random.PRNGKey(0)
    pkey, xkey = jax.random.split(key)
    params = make_params(pkey)
    prepped = prepare_params(params)          # one-time weight prep (outside jit)

    # Input batch in PyTorch NCHW layout: (batch=4, channels=3, 16x16).
    x = jax.random.uniform(xkey, (4, C0, H, W), jnp.float32)

    fwd = jax.jit(neural_algorithm_forward)
    out = jax.block_until_ready(fwd(x, prepped))
    ref = jax.block_until_ready(_reference_forward(x, params))

    assert out.shape == (4, C2, HP, WP), out.shape
    assert out.dtype == jnp.float32
    assert bool(jnp.all(jnp.isfinite(out)))
    assert bool(jnp.allclose(out, ref, atol=1e-4, rtol=1e-4)), \
        float(jnp.max(jnp.abs(out - ref)))
    print("KERNEL_OK")
</pallas_src>

<mosaic_0001>
module attributes {stable_mosaic.version = 11 : i64} {
  func.func @_fused_forward_kernel(%arg0: i32, %arg1: memref<2x3x16x16xf32, #tpu.memory_space<vmem>>, %arg2: memref<1x1x48xf32, #tpu.memory_space<vmem>>, %arg3: memref<3x48x128xf32, #tpu.memory_space<vmem>>, %arg4: memref<1x128xf32, #tpu.memory_space<vmem>>, %arg5: memref<3x128x128xf32, #tpu.memory_space<vmem>>, %arg6: memref<1x128xf32, #tpu.memory_space<vmem>>, %arg7: memref<3x128x128xf32, #tpu.memory_space<vmem>>, %arg8: memref<1x128xf32, #tpu.memory_space<vmem>>, %arg9: memref<2x8x128xf32, #tpu.memory_space<vmem>>) attributes {dimension_semantics = [#tpu.dimension_semantics<parallel>], iteration_bounds = array<i64: 2>, scalar_prefetch = 0 : i64, scratch_operands = 0 : i64, tpu.core_type = #tpu.core_type<tc>, window_params = [{transform_indices = @transform_0, window_bounds = array<i64: 2, 3, 16, 16>}, {pipeline_mode = #tpu.pipeline_mode<synchronous>, transform_indices = @transform_1, window_bounds = array<i64: 1, 1, 48>}, {pipeline_mode = #tpu.pipeline_mode<synchronous>, transform_indices = @transform_2, window_bounds = array<i64: 3, 48, 128>}, {pipeline_mode = #tpu.pipeline_mode<synchronous>, transform_indices = @transform_3, window_bounds = array<i64: 1, 128>}, {pipeline_mode = #tpu.pipeline_mode<synchronous>, transform_indices = @transform_4, window_bounds = array<i64: 3, 128, 128>}, {pipeline_mode = #tpu.pipeline_mode<synchronous>, transform_indices = @transform_5, window_bounds = array<i64: 1, 128>}, {pipeline_mode = #tpu.pipeline_mode<synchronous>, transform_indices = @transform_6, window_bounds = array<i64: 3, 128, 128>}, {pipeline_mode = #tpu.pipeline_mode<synchronous>, transform_indices = @transform_7, window_bounds = array<i64: 1, 128>}, {transform_indices = @transform_8, window_bounds = array<i64: 2, 8, 128>}]} {
    %c0 = arith.constant 0 : index
    %c0_0 = arith.constant 0 : index
    %c0_1 = arith.constant 0 : index
    %c0_2 = arith.constant 0 : index
    %0 = vector.load %arg1[%c0, %c0_0, %c0_1, %c0_2] : memref<2x3x16x16xf32, #tpu.memory_space<vmem>>, vector<2x3x16x16xf32>
    %1 = vector.extract_strided_slice %0 {offsets = [0, 0, 0, 0], sizes = [2, 1, 16, 16], strides = [1, 1, 1, 1]} : vector<2x3x16x16xf32> to vector<2x1x16x16xf32>
    %2 = vector.shape_cast %1 : vector<2x1x16x16xf32> to vector<2x16x16xf32>
    %3 = vector.extract_strided_slice %0 {offsets = [0, 1, 0, 0], sizes = [2, 1, 16, 16], strides = [1, 1, 1, 1]} : vector<2x3x16x16xf32> to vector<2x1x16x16xf32>
    %4 = vector.shape_cast %3 : vector<2x1x16x16xf32> to vector<2x16x16xf32>
    %5 = vector.extract_strided_slice %0 {offsets = [0, 2, 0, 0], sizes = [2, 1, 16, 16], strides = [1, 1, 1, 1]} : vector<2x3x16x16xf32> to vector<2x1x16x16xf32>
    %6 = vector.shape_cast %5 : vector<2x1x16x16xf32> to vector<2x16x16xf32>
    %7 = tpu.concatenate %2, %4, %6 in 2 : vector<2x16x16xf32>, vector<2x16x16xf32>, vector<2x16x16xf32> -> vector<2x16x48xf32>
    %c0_3 = arith.constant 0 : index
    %c0_4 = arith.constant 0 : index
    %c0_5 = arith.constant 0 : index
    %8 = vector.load %arg2[%c0_3, %c0_4, %c0_5] : memref<1x1x48xf32, #tpu.memory_space<vmem>>, vector<1x1x48xf32>
    %9 = vector.broadcast %8 : vector<1x1x48xf32> to vector<2x16x48xf32>
    %10 = arith.subf %7, %9 : vector<2x16x48xf32>
    %c0_6 = arith.constant 0 : index
    %c0_7 = arith.constant 0 : index
    %11 = vector.load %arg4[%c0_6, %c0_7] : memref<1x128xf32, #tpu.memory_space<vmem>>, vector<1x128xf32>
    %12 = vector.shape_cast %10 : vector<2x16x48xf32> to vector<32x48xf32>
    %cst = arith.constant 0.000000e+00 : f32
    %13 = vector.broadcast %cst : f32 to vector<2x1x48xf32>
    %14 = vector.extract_strided_slice %10 {offsets = [0, 0, 0], sizes = [2, 15, 48], strides = [1, 1, 1]} : vector<2x16x48xf32> to vector<2x15x48xf32>
    %15 = tpu.concatenate %13, %14 in 1 : vector<2x1x48xf32>, vector<2x15x48xf32> -> vector<2x16x48xf32>
    %16 = vector.shape_cast %15 : vector<2x16x48xf32> to vector<32x48xf32>
    %17 = vector.extract_strided_slice %10 {offsets = [0, 1, 0], sizes = [2, 15, 48], strides = [1, 1, 1]} : vector<2x16x48xf32> to vector<2x15x48xf32>
    %18 = tpu.concatenate %17, %13 in 1 : vector<2x15x48xf32>, vector<2x1x48xf32> -> vector<2x16x48xf32>
    %19 = vector.shape_cast %18 : vector<2x16x48xf32> to vector<32x48xf32>
    %c0_8 = arith.constant 0 : index
    %c0_9 = arith.constant 0 : index
    %c0_10 = arith.constant 0 : index
    %20 = vector.load %arg3[%c0_8, %c0_9, %c0_10] : memref<3x48x128xf32, #tpu.memory_space<vmem>>, vector<1x48x128xf32>
    %21 = vector.shape_cast %20 : vector<1x48x128xf32> to vector<48x128xf32>
    %cst_11 = arith.constant dense<0.000000e+00> : vector<32x128xf32>
    %22 = tpu.matmul %16, %21, %cst_11 {dimension_numbers = #tpu.dot_dimension_numbers<[1], [0], [0], [1], [0, 0, 1, 1], [], []>} : vector<32x48xf32>, vector<48x128xf32>, vector<32x128xf32> -> vector<32x128xf32>
    %c1 = arith.constant 1 : index
    %c0_12 = arith.constant 0 : index
    %c0_13 = arith.constant 0 : index
    %23 = vector.load %arg3[%c1, %c0_12, %c0_13] : memref<3x48x128xf32, #tpu.memory_space<vmem>>, vector<1x48x128xf32>
    %24 = vector.shape_cast %23 : vector<1x48x128xf32> to vector<48x128xf32>
    %cst_14 = arith.constant dense<0.000000e+00> : vector<32x128xf32>
    %25 = tpu.matmul %12, %24, %cst_14 {dimension_numbers = #tpu.dot_dimension_numbers<[1], [0], [0], [1], [0, 0, 1, 1], [], []>} : vector<32x48xf32>, vector<48x128xf32>, vector<32x128xf32> -> vector<32x128xf32>
    %26 = arith.addf %22, %25 : vector<32x128xf32>
    %c2 = arith.constant 2 : index
    %c0_15 = arith.constant 0 : index
    %c0_16 = arith.constant 0 : index
    %27 = vector.load %arg3[%c2, %c0_15, %c0_16] : memref<3x48x128xf32, #tpu.memory_space<vmem>>, vector<1x48x128xf32>
    %28 = vector.shape_cast %27 : vector<1x48x128xf32> to vector<48x128xf32>
    %cst_17 = arith.constant dense<0.000000e+00> : vector<32x128xf32>
    %29 = tpu.matmul %19, %28, %cst_17 {dimension_numbers = #tpu.dot_dimension_numbers<[1], [0], [0], [1], [0, 0, 1, 1], [], []>} : vector<32x48xf32>, vector<48x128xf32>, vector<32x128xf32> -> vector<32x128xf32>
    %30 = arith.addf %26, %29 : vector<32x128xf32>
    %31 = vector.broadcast %11 : vector<1x128xf32> to vector<32x128xf32>
    %32 = arith.addf %30, %31 : vector<32x128xf32>
    %cst_18 = arith.constant 0.000000e+00 : f32
    %33 = vector.broadcast %cst_18 : f32 to vector<32x128xf32>
    %34 = arith.maximumf %32, %33 : vector<32x128xf32>
    %35 = vector.shape_cast %34 : vector<32x128xf32> to vector<2x16x128xf32>
    %c0_19 = arith.constant 0 : index
    %c0_20 = arith.constant 0 : index
    %36 = vector.load %arg6[%c0_19, %c0_20] : memref<1x128xf32, #tpu.memory_space<vmem>>, vector<1x128xf32>
    %37 = vector.shape_cast %35 : vector<2x16x128xf32> to vector<32x128xf32>
    %cst_21 = arith.constant 0.000000e+00 : f32
    %38 = vector.broadcast %cst_21 : f32 to vector<2x1x128xf32>
    %39 = vector.extract_strided_slice %35 {offsets = [0, 0, 0], sizes = [2, 15, 128], strides = [1, 1, 1]} : vector<2x16x128xf32> to vector<2x15x128xf32>
    %40 = tpu.concatenate %38, %39 in 1 : vector<2x1x128xf32>, vector<2x15x128xf32> -> vector<2x16x128xf32>
    %41 = vector.shape_cast %40 : vector<2x16x128xf32> to vector<32x128xf32>
    %42 = vector.extract_strided_slice %35 {offsets = [0, 1, 0], sizes = [2, 15, 128], strides = [1, 1, 1]} : vector<2x16x128xf32> to vector<2x15x128xf32>
    %43 = tpu.concatenate %42, %38 in 1 : vector<2x15x128xf32>, vector<2x1x128xf32> -> vector<2x16x128xf32>
    %44 = vector.shape_cast %43 : vector<2x16x128xf32> to vector<32x128xf32>
    %c0_22 = arith.constant 0 : index
    %c0_23 = arith.constant 0 : index
    %c0_24 = arith.constant 0 : index
    %45 = vector.load %arg5[%c0_22, %c0_23, %c0_24] : memref<3x128x128xf32, #tpu.memory_space<vmem>>, vector<1x128x128xf32>
    %46 = vector.shape_cast %45 : vector<1x128x128xf32> to vector<128x128xf32>
    %cst_25 = arith.constant dense<0.000000e+00> : vector<32x128xf32>
    %47 = tpu.matmul %41, %46, %cst_25 {dimension_numbers = #tpu.dot_dimension_numbers<[1], [0], [0], [1], [0, 0, 1, 1], [], []>} : vector<32x128xf32>, vector<128x128xf32>, vector<32x128xf32> -> vector<32x128xf32>
    %c1_26 = arith.constant 1 : index
    %c0_27 = arith.constant 0 : index
    %c0_28 = arith.constant 0 : index
    %48 = vector.load %arg5[%c1_26, %c0_27, %c0_28] : memref<3x128x128xf32, #tpu.memory_space<vmem>>, vector<1x128x128xf32>
    %49 = vector.shape_cast %48 : vector<1x128x128xf32> to vector<128x128xf32>
    %cst_29 = arith.constant dense<0.000000e+00> : vector<32x128xf32>
    %50 = tpu.matmul %37, %49, %cst_29 {dimension_numbers = #tpu.dot_dimension_numbers<[1], [0], [0], [1], [0, 0, 1, 1], [], []>} : vector<32x128xf32>, vector<128x128xf32>, vector<32x128xf32> -> vector<32x128xf32>
    %51 = arith.addf %47, %50 : vector<32x128xf32>
    %c2_30 = arith.constant 2 : index
    %c0_31 = arith.constant 0 : index
    %c0_32 = arith.constant 0 : index
    %52 = vector.load %arg5[%c2_30, %c0_31, %c0_32] : memref<3x128x128xf32, #tpu.memory_space<vmem>>, vector<1x128x128xf32>
    %53 = vector.shape_cast %52 : vector<1x128x128xf32> to vector<128x128xf32>
    %cst_33 = arith.constant dense<0.000000e+00> : vector<32x128xf32>
    %54 = tpu.matmul %44, %53, %cst_33 {dimension_numbers = #tpu.dot_dimension_numbers<[1], [0], [0], [1], [0, 0, 1, 1], [], []>} : vector<32x128xf32>, vector<128x128xf32>, vector<32x128xf32> -> vector<32x128xf32>
    %55 = arith.addf %51, %54 : vector<32x128xf32>
    %56 = vector.broadcast %36 : vector<1x128xf32> to vector<32x128xf32>
    %57 = arith.addf %55, %56 : vector<32x128xf32>
    %cst_34 = arith.constant 0.000000e+00 : f32
    %58 = vector.broadcast %cst_34 : f32 to vector<32x128xf32>
    %59 = arith.maximumf %57, %58 : vector<32x128xf32>
    %60 = vector.shape_cast %59 : vector<32x128xf32> to vector<2x16x128xf32>
    %61 = vector.shape_cast %60 : vector<2x16x128xf32> to vector<2x8x2x128xf32>
    %62 = vector.extract_strided_slice %61 {offsets = [0, 0, 0, 0], sizes = [2, 8, 1, 128], strides = [1, 1, 1, 1]} : vector<2x8x2x128xf32> to vector<2x8x1x128xf32>
    %63 = vector.shape_cast %62 : vector<2x8x1x128xf32> to vector<2x8x128xf32>
    %64 = vector.extract_strided_slice %61 {offsets = [0, 0, 1, 0], sizes = [2, 8, 1, 128], strides = [1, 1, 1, 1]} : vector<2x8x2x128xf32> to vector<2x8x1x128xf32>
    %65 = vector.shape_cast %64 : vector<2x8x1x128xf32> to vector<2x8x128xf32>
    %66 = arith.maximumf %63, %65 : vector<2x8x128xf32>
    %67 = vector.extract_strided_slice %66 {offsets = [0, 0, 1], sizes = [2, 8, 127], strides = [1, 1, 1]} : vector<2x8x128xf32> to vector<2x8x127xf32>
    %68 = vector.extract_strided_slice %66 {offsets = [0, 0, 0], sizes = [2, 8, 1], strides = [1, 1, 1]} : vector<2x8x128xf32> to vector<2x8x1xf32>
    %69 = tpu.concatenate %67, %68 in 2 : vector<2x8x127xf32>, vector<2x8x1xf32> -> vector<2x8x128xf32>
    %70 = arith.maximumf %66, %69 : vector<2x8x128xf32>
    %c0_35 = arith.constant 0 : index
    %c0_36 = arith.constant 0 : index
    %71 = vector.load %arg8[%c0_35, %c0_36] : memref<1x128xf32, #tpu.memory_space<vmem>>, vector<1x128xf32>
    %72 = vector.shape_cast %70 : vector<2x8x128xf32> to vector<16x128xf32>
    %cst_37 = arith.constant 0.000000e+00 : f32
    %73 = vector.broadcast %cst_37 : f32 to vector<2x1x128xf32>
    %74 = vector.extract_strided_slice %70 {offsets = [0, 0, 0], sizes = [2, 7, 128], strides = [1, 1, 1]} : vector<2x8x128xf32> to vector<2x7x128xf32>
    %75 = tpu.concatenate %73, %74 in 1 : vector<2x1x128xf32>, vector<2x7x128xf32> -> vector<2x8x128xf32>
    %76 = vector.shape_cast %75 : vector<2x8x128xf32> to vector<16x128xf32>
    %77 = vector.extract_strided_slice %70 {offsets = [0, 1, 0], sizes = [2, 7, 128], strides = [1, 1, 1]} : vector<2x8x128xf32> to vector<2x7x128xf32>
    %78 = tpu.concatenate %77, %73 in 1 : vector<2x7x128xf32>, vector<2x1x128xf32> -> vector<2x8x128xf32>
    %79 = vector.shape_cast %78 : vector<2x8x128xf32> to vector<16x128xf32>
    %c0_38 = arith.constant 0 : index
    %c0_39 = arith.constant 0 : index
    %c0_40 = arith.constant 0 : index
    %80 = vector.load %arg7[%c0_38, %c0_39, %c0_40] : memref<3x128x128xf32, #tpu.memory_space<vmem>>, vector<1x128x128xf32>
    %81 = vector.shape_cast %80 : vector<1x128x128xf32> to vector<128x128xf32>
    %cst_41 = arith.constant dense<0.000000e+00> : vector<16x128xf32>
    %82 = tpu.matmul %76, %81, %cst_41 {dimension_numbers = #tpu.dot_dimension_numbers<[1], [0], [0], [1], [0, 0, 1, 1], [], []>} : vector<16x128xf32>, vector<128x128xf32>, vector<16x128xf32> -> vector<16x128xf32>
    %c1_42 = arith.constant 1 : index
    %c0_43 = arith.constant 0 : index
    %c0_44 = arith.constant 0 : index
    %83 = vector.load %arg7[%c1_42, %c0_43, %c0_44] : memref<3x128x128xf32, #tpu.memory_space<vmem>>, vector<1x128x128xf32>
    %84 = vector.shape_cast %83 : vector<1x128x128xf32> to vector<128x128xf32>
    %cst_45 = arith.constant dense<0.000000e+00> : vector<16x128xf32>
    %85 = tpu.matmul %72, %84, %cst_45 {dimension_numbers = #tpu.dot_dimension_numbers<[1], [0], [0], [1], [0, 0, 1, 1], [], []>} : vector<16x128xf32>, vector<128x128xf32>, vector<16x128xf32> -> vector<16x128xf32>
    %86 = arith.addf %82, %85 : vector<16x128xf32>
    %c2_46 = arith.constant 2 : index
    %c0_47 = arith.constant 0 : index
    %c0_48 = arith.constant 0 : index
    %87 = vector.load %arg7[%c2_46, %c0_47, %c0_48] : memref<3x128x128xf32, #tpu.memory_space<vmem>>, vector<1x128x128xf32>
    %88 = vector.shape_cast %87 : vector<1x128x128xf32> to vector<128x128xf32>
    %cst_49 = arith.constant dense<0.000000e+00> : vector<16x128xf32>
    %89 = tpu.matmul %79, %88, %cst_49 {dimension_numbers = #tpu.dot_dimension_numbers<[1], [0], [0], [1], [0, 0, 1, 1], [], []>} : vector<16x128xf32>, vector<128x128xf32>, vector<16x128xf32> -> vector<16x128xf32>
    %90 = arith.addf %86, %89 : vector<16x128xf32>
    %91 = vector.broadcast %71 : vector<1x128xf32> to vector<16x128xf32>
    %92 = arith.addf %90, %91 : vector<16x128xf32>
    %93 = vector.shape_cast %92 : vector<16x128xf32> to vector<2x8x128xf32>
    %c0_50 = arith.constant 0 : index
    %c0_51 = arith.constant 0 : index
    %c0_52 = arith.constant 0 : index
    %94 = vector.load %arg9[%c0_50, %c0_51, %c0_52] : memref<2x8x128xf32, #tpu.memory_space<vmem>>, vector<2x8x128xf32>
    tpu.vector_store %arg9[%c0_50, %c0_51, %c0_52], %93 {strides = array<i32>} : memref<2x8x128xf32, #tpu.memory_space<vmem>>, vector<2x8x128xf32>,
    return
  }
  func.func @transform_0(%arg0: i32) -> (i32, i32, i32, i32) {
    %c0_i32 = arith.constant 0 : i32
    %c0_i32_0 = arith.constant 0 : i32
    %c0_i32_1 = arith.constant 0 : i32
    %c0_i32_2 = arith.constant 0 : i32
    return %arg0, %c0_i32, %c0_i32_0, %c0_i32_1 : i32, i32, i32, i32
  }
  func.func @transform_1(%arg0: i32) -> (i32, i32, i32) {
    %c0_i32 = arith.constant 0 : i32
    %c0_i32_0 = arith.constant 0 : i32
    %c0_i32_1 = arith.constant 0 : i32
    %c0_i32_2 = arith.constant 0 : i32
    return %c0_i32, %c0_i32_0, %c0_i32_1 : i32, i32, i32
  }
  func.func @transform_2(%arg0: i32) -> (i32, i32, i32) {
    %c0_i32 = arith.constant 0 : i32
    %c0_i32_0 = arith.constant 0 : i32
    %c0_i32_1 = arith.constant 0 : i32
    %c0_i32_2 = arith.constant 0 : i32
    return %c0_i32, %c0_i32_0, %c0_i32_1 : i32, i32, i32
  }
  func.func @transform_3(%arg0: i32) -> (i32, i32) {
    %c0_i32 = arith.constant 0 : i32
    %c0_i32_0 = arith.constant 0 : i32
    %c0_i32_1 = arith.constant 0 : i32
    return %c0_i32, %c0_i32_0 : i32, i32
  }
  func.func @transform_4(%arg0: i32) -> (i32, i32, i32) {
    %c0_i32 = arith.constant 0 : i32
    %c0_i32_0 = arith.constant 0 : i32
    %c0_i32_1 = arith.constant 0 : i32
    %c0_i32_2 = arith.constant 0 : i32
    return %c0_i32, %c0_i32_0, %c0_i32_1 : i32, i32, i32
  }
  func.func @transform_5(%arg0: i32) -> (i32, i32) {
    %c0_i32 = arith.constant 0 : i32
    %c0_i32_0 = arith.constant 0 : i32
    %c0_i32_1 = arith.constant 0 : i32
    return %c0_i32, %c0_i32_0 : i32, i32
  }
  func.func @transform_6(%arg0: i32) -> (i32, i32, i32) {
    %c0_i32 = arith.constant 0 : i32
    %c0_i32_0 = arith.constant 0 : i32
    %c0_i32_1 = arith.constant 0 : i32
    %c0_i32_2 = arith.constant 0 : i32
    return %c0_i32, %c0_i32_0, %c0_i32_1 : i32, i32, i32
  }
  func.func @transform_7(%arg0: i32) -> (i32, i32) {
    %c0_i32 = arith.constant 0 : i32
    %c0_i32_0 = arith.constant 0 : i32
    %c0_i32_1 = arith.constant 0 : i32
    return %c0_i32, %c0_i32_0 : i32, i32
  }
  func.func @transform_8(%arg0: i32) -> (i32, i32, i32) {
    %c0_i32 = arith.constant 0 : i32
    %c0_i32_0 = arith.constant 0 : i32
    %c0_i32_1 = arith.constant 0 : i32
    return %arg0, %c0_i32, %c0_i32_0 : i32, i32, i32
  }
}

</mosaic_0001>

<llo_original>
// kernel: neural_algorithm_forward.1
$region0: #{neural_algorithm_forward.1}
  #allocation0 [shape = 'u32[]', space=smem, size = 0x4, offset = 0x4, fixed_abs, tag = 'smem constant byte address 0x4 - core index']
  #allocation1 [shape = 'u32[144,128]{1,0:T(1,128)}', space=vmem, size = 0x12000, scoped, tag = 'internal scratch']
  %s0 = inlined_call_operand.hbm [shape: f32[4,3,16,16], index: 0, kind: input, shape index: {}]
  %s1 = inlined_call_operand.vmem [shape: f32[1,1,48], index: 1, kind: input, shape index: {}]
  %s2 = inlined_call_operand.hbm [shape: f32[3,48,128], index: 2, kind: input, shape index: {}]
  %s3 = inlined_call_operand.hbm [shape: f32[1,128], index: 3, kind: input, shape index: {}]
  %s4 = inlined_call_operand.hbm [shape: f32[3,128,128], index: 4, kind: input, shape index: {}]
  %s5 = inlined_call_operand.vmem [shape: f32[1,128], index: 5, kind: input, shape index: {}]
  %s6 = inlined_call_operand.hbm [shape: f32[3,128,128], index: 6, kind: input, shape index: {}]
  %s7 = inlined_call_operand.vmem [shape: f32[1,128], index: 7, kind: input, shape index: {}]
  %s8 = inlined_call_operand.vmem [shape: f32[4,8,128], index: 8, kind: output, shape index: {}]
  %s9 = sld [smem:[#allocation0]]
  $region85: #{neural_algorithm_forward.1} parent=0
    _
  %s11 = ssub.s32 1, %s9
  %s12 = scalar_select 0, %s11, %s9
  $region1: #{neural_algorithm_forward.1} parent=0
    #allocation2 [shape = 'u8[98304]{0}', space=vmem, size = 0x18000, scoped, tag = 'input window, operand 0']
    #allocation3 [shape = 's32[2]{0}', space=sflag, size = 0x8, scoped, tag = 'scoped memory for neural_algorithm_forward.1']
    #allocation4 [shape = 'u8[73728]{0}', space=vmem, size = 0x12000, scoped, tag = 'input window, operand 2, single buffered']
    #allocation5 [shape = 's32[1]{0}', space=sflag, size = 0x4, scoped, tag = 'scoped memory for neural_algorithm_forward.1']
    #allocation6 [shape = 'u8[512]{0}', space=vmem, size = 0x400, scoped, tag = 'input window, operand 3, single buffered']
    #allocation7 [shape = 'u8[196608]{0}', space=vmem, size = 0x30000, scoped, tag = 'input window, operand 4, single buffered']
    #allocation8 [shape = 's32[1]{0}', space=sflag, size = 0x4, scoped, tag = 'scoped memory for neural_algorithm_forward.1']
    #allocation9 [shape = 'u8[196608]{0}', space=vmem, size = 0x30000, scoped, tag = 'input window, operand 6, single buffered']
    %13 = vsyncpa [#allocation3], 0
    %s14 = scalar_lea.sflag [#allocation3], 1
    %15 = vsyncpa %s14, 0
    %16 = vsyncpa [#allocation5], 0
    %17 = vsyncpa [#allocation8], 0
    loop: start=0, step=1, limit=4
    $region2: #{neural_algorithm_forward.1} parent=1 // loop_pre_header
      _
    $region3: #{neural_algorithm_forward.1} parent=1 // loop_header
      %s19 = sphi 0, %s23
      %p20 = scmp.ge.s32.totalorder %s19, 4
      %s29 = sphi 0, %s31
      %s32 = sphi 0, %s29
      %s33 = sphi 0, %s32
      %s49 = sphi 0, %s33
      %s53 = sphi 0, %s53
      %s55 = sphi 0, %s53
      %s56 = sphi 0, %s55
      %s70 = sphi 0, %s56
      %s74 = sphi 0, %s74
      %s76 = sphi 0, %s74
      %s77 = sphi 0, %s76
      %s91 = sphi 0, %s77
      %s95 = sphi 0, %s95
      %s97 = sphi 0, %s95
      %s98 = sphi 0, %s97
      %s112 = sphi 0, %s98
      %s116 = sphi 0, %s116
      %s118 = sphi 0, %s116
      %s119 = sphi 0, %s118
      %s133 = sphi 0, %s119
      %s137 = sphi 0, %s137
      %s139 = sphi 0, %s137
      %s140 = sphi 0, %s139
      %s154 = sphi 0, %s140
      %s158 = sphi 0, %s158
      %s160 = sphi 0, %s158
      %s161 = sphi 0, %s160
      %s175 = sphi 0, %s161
      %s179 = sphi 0, %s179
      %s181 = sphi 0, %s179
      %s182 = sphi 0, %s181
      %s196 = sphi 0, %s182
      %s202 = sphi 0, %s204
      %s205 = sphi 0, %s202
      %s206 = sphi 0, %s205
      %s222 = sphi 0, %s206
    $region4: #{neural_algorithm_forward.1} parent=1 // loop_header_branch
      %22 = sbr.rel (%p20) target = $region8
    $region5: #{neural_algorithm_forward.1} parent=1 // loop_body
      %s24 = ssub.s32 %s19, 1
      %s25 = ssub.s32 %s19, 2
      %s26 = sadd.s32 %s19, 1
      %s27 = ssub.s32 %s19, %s26
      %p28 = scmp.eq.s32.totalorder %s27, 0
      %s30 = sadd.s32 %s29, 1
      %s31 = scalar_select %p28, %s29, %s30
      %p34 = pneg %p28
      %p35 = scmp.eq.s32.totalorder %s19, 1
      %p36 = por %p34, %p35
      %p37 = scmp.ne.s32.totalorder %s29, %s32
      %p38 = scmp.eq.s32.totalorder %s19, 0
      %p39 = por %p37, %p38
      %p40 = scmp.ne.s32.totalorder %s29, %s32
      %p41 = scmp.eq.s32.totalorder %s24, 1
      %p42 = por %p40, %p41
      %p43 = scmp.ne.s32.totalorder %s32, %s33
      %p44 = scmp.eq.s32.totalorder %s24, 0
      %p45 = por %p43, %p44
      %p46 = scmp.ne.s32.totalorder %s32, %s33
      %p47 = scmp.eq.s32.totalorder %s25, 1
      %p48 = por %p46, %p47
      %p50 = scmp.ne.s32.totalorder %s33, %s49
      %p51 = scmp.eq.s32.totalorder %s25, 0
      %p52 = por %p50, %p51
      %s54 = sadd.s32 %s53, 1
      %p57 = scmp.eq.s32.totalorder %s19, 1
      %p58 = scmp.ne.s32.totalorder %s53, %s55
      %p59 = scmp.eq.s32.totalorder %s19, 0
      %p60 = por %p58, %p59
      %p61 = scmp.ne.s32.totalorder %s53, %s55
      %p62 = scmp.eq.s32.totalorder %s24, 1
      %p63 = por %p61, %p62
      %p64 = scmp.ne.s32.totalorder %s55, %s56
      %p65 = scmp.eq.s32.totalorder %s24, 0
      %p66 = por %p64, %p65
      %p67 = scmp.ne.s32.totalorder %s55, %s56
      %p68 = scmp.eq.s32.totalorder %s25, 1
      %p69 = por %p67, %p68
      %p71 = scmp.ne.s32.totalorder %s56, %s70
      %p72 = scmp.eq.s32.totalorder %s25, 0
      %p73 = por %p71, %p72
      %s75 = sadd.s32 %s74, 1
      %p78 = scmp.eq.s32.totalorder %s19, 1
      %p79 = scmp.ne.s32.totalorder %s74, %s76
      %p80 = scmp.eq.s32.totalorder %s19, 0
      %p81 = por %p79, %p80
      %p82 = scmp.ne.s32.totalorder %s74, %s76
      %p83 = scmp.eq.s32.totalorder %s24, 1
      %p84 = por %p82, %p83
      %p85 = scmp.ne.s32.totalorder %s76, %s77
      %p86 = scmp.eq.s32.totalorder %s24, 0
      %p87 = por %p85, %p86
      %p88 = scmp.ne.s32.totalorder %s76, %s77
      %p89 = scmp.eq.s32.totalorder %s25, 1
      %p90 = por %p88, %p89
      %p92 = scmp.ne.s32.totalorder %s77, %s91
      %p93 = scmp.eq.s32.totalorder %s25, 0
      %p94 = por %p92, %p93
      %s96 = sadd.s32 %s95, 1
      %p99 = scmp.eq.s32.totalorder %s19, 1
      %p100 = scmp.ne.s32.totalorder %s95, %s97
      %p101 = scmp.eq.s32.totalorder %s19, 0
      %p102 = por %p100, %p101
      %p103 = scmp.ne.s32.totalorder %s95, %s97
      %p104 = scmp.eq.s32.totalorder %s24, 1
      %p105 = por %p103, %p104
      %p106 = scmp.ne.s32.totalorder %s97, %s98
      %p107 = scmp.eq.s32.totalorder %s24, 0
      %p108 = por %p106, %p107
      %p109 = scmp.ne.s32.totalorder %s97, %s98
      %p110 = scmp.eq.s32.totalorder %s25, 1
      %p111 = por %p109, %p110
      %p113 = scmp.ne.s32.totalorder %s98, %s112
      %p114 = scmp.eq.s32.totalorder %s25, 0
      %p115 = por %p113, %p114
      %s117 = sadd.s32 %s116, 1
      %p120 = scmp.eq.s32.totalorder %s19, 1
      %p121 = scmp.ne.s32.totalorder %s116, %s118
      %p122 = scmp.eq.s32.totalorder %s19, 0
      %p123 = por %p121, %p122
      %p124 = scmp.ne.s32.totalorder %s116, %s118
      %p125 = scmp.eq.s32.totalorder %s24, 1
      %p126 = por %p124, %p125
      %p127 = scmp.ne.s32.totalorder %s118, %s119
      %p128 = scmp.eq.s32.totalorder %s24, 0
      %p129 = por %p127, %p128
      %p130 = scmp.ne.s32.totalorder %s118, %s119
      %p131 = scmp.eq.s32.totalorder %s25, 1
      %p132 = por %p130, %p131
      %p134 = scmp.ne.s32.totalorder %s119, %s133
      %p135 = scmp.eq.s32.totalorder %s25, 0
      %p136 = por %p134, %p135
      %s138 = sadd.s32 %s137, 1
      %p141 = scmp.eq.s32.totalorder %s19, 1
      %p142 = scmp.ne.s32.totalorder %s137, %s139
      %p143 = scmp.eq.s32.totalorder %s19, 0
      %p144 = por %p142, %p143
      %p145 = scmp.ne.s32.totalorder %s137, %s139
      %p146 = scmp.eq.s32.totalorder %s24, 1
      %p147 = por %p145, %p146
      %p148 = scmp.ne.s32.totalorder %s139, %s140
      %p149 = scmp.eq.s32.totalorder %s24, 0
      %p150 = por %p148, %p149
      %p151 = scmp.ne.s32.totalorder %s139, %s140
      %p152 = scmp.eq.s32.totalorder %s25, 1
      %p153 = por %p151, %p152
      %p155 = scmp.ne.s32.totalorder %s140, %s154
      %p156 = scmp.eq.s32.totalorder %s25, 0
      %p157 = por %p155, %p156
      %s159 = sadd.s32 %s158, 1
      %p162 = scmp.eq.s32.totalorder %s19, 1
      %p163 = scmp.ne.s32.totalorder %s158, %s160
      %p164 = scmp.eq.s32.totalorder %s19, 0
      %p165 = por %p163, %p164
      %p166 = scmp.ne.s32.totalorder %s158, %s160
      %p167 = scmp.eq.s32.totalorder %s24, 1
      %p168 = por %p166, %p167
      %p169 = scmp.ne.s32.totalorder %s160, %s161
      %p170 = scmp.eq.s32.totalorder %s24, 0
      %p171 = por %p169, %p170
      %p172 = scmp.ne.s32.totalorder %s160, %s161
      %p173 = scmp.eq.s32.totalorder %s25, 1
      %p174 = por %p172, %p173
      %p176 = scmp.ne.s32.totalorder %s161, %s175
      %p177 = scmp.eq.s32.totalorder %s25, 0
      %p178 = por %p176, %p177
      %s180 = sadd.s32 %s179, 1
      %p183 = scmp.eq.s32.totalorder %s19, 1
      %p184 = scmp.ne.s32.totalorder %s179, %s181
      %p185 = scmp.eq.s32.totalorder %s19, 0
      %p186 = por %p184, %p185
      %p187 = scmp.ne.s32.totalorder %s179, %s181
      %p188 = scmp.eq.s32.totalorder %s24, 1
      %p189 = por %p187, %p188
      %p190 = scmp.ne.s32.totalorder %s181, %s182
      %p191 = scmp.eq.s32.totalorder %s24, 0
      %p192 = por %p190, %p191
      %p193 = scmp.ne.s32.totalorder %s181, %s182
      %p194 = scmp.eq.s32.totalorder %s25, 1
      %p195 = por %p193, %p194
      %p197 = scmp.ne.s32.totalorder %s182, %s196
      %p198 = scmp.eq.s32.totalorder %s25, 0
      %p199 = por %p197, %p198
      %s200 = ssub.s32 %s19, %s26
      %p201 = scmp.eq.s32.totalorder %s200, 0
      %s203 = sadd.s32 %s202, 1
      %s204 = scalar_select %p201, %s202, %s203
      %p207 = pneg %p201
      %p208 = scmp.eq.s32.totalorder %s19, 1
      %p209 = por %p207, %p208
      %p210 = scmp.ne.s32.totalorder %s202, %s205
      %p211 = scmp.eq.s32.totalorder %s19, 0
      %p212 = por %p210, %p211
      %p213 = scmp.ne.s32.totalorder %s202, %s205
      %p214 = scmp.eq.s32.totalorder %s24, 1
      %p215 = por %p213, %p214
      %p216 = scmp.ne.s32.totalorder %s205, %s206
      %p217 = scmp.eq.s32.totalorder %s24, 0
      %p218 = por %p216, %p217
      %p219 = scmp.ne.s32.totalorder %s205, %s206
      %p220 = scmp.eq.s32.totalorder %s25, 1
      %p221 = por %p219, %p220
      %p223 = scmp.ne.s32.totalorder %s206, %s222
      %p224 = scmp.eq.s32.totalorder %s25, 0
      %p225 = por %p223, %p224
      %p226 = scmp.le.s32.totalorder 1, %s19
      %p227 = scmp.lt.s32.totalorder %s19, 3
      %p228 = pnand %p226, %p227
      %p229 = pneg %p228
      // Predicated region
      $region9: #{neural_algorithm_forward.1} parent=5 // pred_check
        _
      $region10: #{neural_algorithm_forward.1} parent=5 // pred_check_branch
        %231 = sbr.rel (%p228) target = $region12
      $region11: #{neural_algorithm_forward.1} parent=5 // pred_region
        %s232 = ssub.s32 %s19, 1
        // Predicated region
        $region13: #{neural_algorithm_forward.1} parent=11 // pred_check
          %p233 = pneg %p66
        $region14: #{neural_algorithm_forward.1} parent=11 // pred_check_branch
          %235 = sbr.rel (%p233) target = $region16
        $region15: #{neural_algorithm_forward.1} parent=11 // pred_region
          _
        $region16: #{neural_algorithm_forward.1} parent=11 // pred_fallthru
          _
        // Predicated region
        $region17: #{neural_algorithm_forward.1} parent=11 // pred_check
          %p236 = pneg %p87
        $region18: #{neural_algorithm_forward.1} parent=11 // pred_check_branch
          %238 = sbr.rel (%p236) target = $region20
        $region19: #{neural_algorithm_forward.1} parent=11 // pred_region
          %s240 = ssub.s32 2304, 2304
          %241 = vsyncadd [#allocation5], %s240
          %s242 = sshll.u32 [#allocation4], 4
          %s243 = int_to_ptr.vmem [resolvable:$true] %s242
          %248 = dma.hbm_to_vmem [thread:$0]  %s2, 2304, %s243, [#allocation5], 128, 128, 8
        $region20: #{neural_algorithm_forward.1} parent=11 // pred_fallthru
          _
        // Predicated region
        $region21: #{neural_algorithm_forward.1} parent=11 // pred_check
          %p249 = pneg %p108
        $region22: #{neural_algorithm_forward.1} parent=11 // pred_check_branch
          %251 = sbr.rel (%p249) target = $region24
        $region23: #{neural_algorithm_forward.1} parent=11 // pred_region
          %s253 = ssub.s32 16, 16
          %254 = vsyncadd [#allocation5], %s253
          %s256 = sshll.u32 [#allocation6], 4
          %s257 = int_to_ptr.vmem [resolvable:$true] %s256
          %259 = dma.hbm_to_vmem [thread:$0]  %s3, 16, %s257, [#allocation5]
        $region24: #{neural_algorithm_forward.1} parent=11 // pred_fallthru
          _
        // Predicated region
        $region25: #{neural_algorithm_forward.1} parent=11 // pred_check
          %p260 = pneg %p129
        $region26: #{neural_algorithm_forward.1} parent=11 // pred_check_branch
          %262 = sbr.rel (%p260) target = $region28
        $region27: #{neural_algorithm_forward.1} parent=11 // pred_region
          %s264 = ssub.s32 6144, 6144
          %265 = vsyncadd [#allocation8], %s264
          %s266 = sshll.u32 [#allocation7], 4
          %s267 = int_to_ptr.vmem [resolvable:$true] %s266
          %272 = dma.hbm_to_vmem [thread:$0]  %s4, 6144, %s267, [#allocation8], 128, 128, 8
        $region28: #{neural_algorithm_forward.1} parent=11 // pred_fallthru
          _
        // Predicated region
        $region29: #{neural_algorithm_forward.1} parent=11 // pred_check
          %p273 = pneg %p150
        $region30: #{neural_algorithm_forward.1} parent=11 // pred_check_branch
          %275 = sbr.rel (%p273) target = $region32
        $region31: #{neural_algorithm_forward.1} parent=11 // pred_region
          _
        $region32: #{neural_algorithm_forward.1} parent=11 // pred_fallthru
          _
        // Predicated region
        $region33: #{neural_algorithm_forward.1} parent=11 // pred_check
          %p276 = pneg %p171
        $region34: #{neural_algorithm_forward.1} parent=11 // pred_check_branch
          %278 = sbr.rel (%p276) target = $region36
        $region35: #{neural_algorithm_forward.1} parent=11 // pred_region
          %s280 = ssub.s32 6144, 6144
          %281 = vsyncadd [#allocation8], %s280
          %s282 = sshll.u32 [#allocation9], 4
          %s283 = int_to_ptr.vmem [resolvable:$true] %s282
          %288 = dma.hbm_to_vmem [thread:$0]  %s6, 6144, %s283, [#allocation8], 128, 128, 8
        $region36: #{neural_algorithm_forward.1} parent=11 // pred_fallthru
          _
        // Predicated region
        $region37: #{neural_algorithm_forward.1} parent=11 // pred_check
          %p289 = pneg %p192
        $region38: #{neural_algorithm_forward.1} parent=11 // pred_check_branch
          %291 = sbr.rel (%p289) target = $region40
        $region39: #{neural_algorithm_forward.1} parent=11 // pred_region
          _
        $region40: #{neural_algorithm_forward.1} parent=11 // pred_fallthru
          _
      $region12: #{neural_algorithm_forward.1} parent=5 // pred_fallthru
        _
      %p292 = scmp.lt.s32.totalorder %s19, 2
      // Predicated region
      $region41: #{neural_algorithm_forward.1} parent=5 // pred_check
        %p293 = pneg %p292
      $region42: #{neural_algorithm_forward.1} parent=5 // pred_check_branch
        %295 = sbr.rel (%p293) target = $region44
      $region43: #{neural_algorithm_forward.1} parent=5 // pred_region
        // Predicated region
        $region45: #{neural_algorithm_forward.1} parent=43 // pred_check
          %p296 = pneg %p39
        $region46: #{neural_algorithm_forward.1} parent=43 // pred_check_branch
          %298 = sbr.rel (%p296) target = $region48
        $region47: #{neural_algorithm_forward.1} parent=43 // pred_region
          %s299 = sand.u32 %s29, 1
          %s300 = scalar_lea.sflag [#allocation3], %s299
          %s301 = sand.u32 %s29, 1
          %s302 = smul.addr %s301, 96
          %s303 = scalar_lea.vmem [#allocation2], %s302
          %s304 = smul.u32 2, %s19
          %s306 = ssub.s32 1536, 1536
          %307 = vsyncadd %s300, %s306
          %s308 = smul.addr %s304, 6
          %s309 = smul.addr %s308, 128
          %s310 = scalar_lea.hbm %s0, %s309
          %s311 = sshll.u32 %s303, 4
          %s312 = int_to_ptr.vmem [resolvable:$true] %s311
          %317 = dma.hbm_to_vmem [thread:$0]  %s310, 1536, %s312, %s300, 128, 128, 8
        $region48: #{neural_algorithm_forward.1} parent=43 // pred_fallthru
          _
      $region44: #{neural_algorithm_forward.1} parent=5 // pred_fallthru
        _
      %p318 = scmp.le.s32.totalorder 1, %s19
      %p319 = scmp.lt.s32.totalorder %s19, 3
      %p320 = pnand %p318, %p319
      %p321 = pneg %p320
      // Predicated region
      $region49: #{neural_algorithm_forward.1} parent=5 // pred_check
        _
      $region50: #{neural_algorithm_forward.1} parent=5 // pred_check_branch
        %323 = sbr.rel (%p320) target = $region52
      $region51: #{neural_algorithm_forward.1} parent=5 // pred_region
        %s324 = ssub.s32 %s19, 1
        %s325 = sand.u32 %s32, 1
        %s326 = scalar_lea.sflag [#allocation3], %s325
        %s327 = sand.u32 %s32, 1
        %s328 = smul.addr %s327, 96
        %s329 = scalar_lea.vmem [#allocation2], %s328
        // Predicated region
        $region53: #{neural_algorithm_forward.1} parent=51 // pred_check
          %p330 = pneg %p45
        $region54: #{neural_algorithm_forward.1} parent=51 // pred_check_branch
          %332 = sbr.rel (%p330) target = $region56
        $region55: #{neural_algorithm_forward.1} parent=51 // pred_region
          %333 = dma.done %s326, 1536
        $region56: #{neural_algorithm_forward.1} parent=51 // pred_fallthru
          _
        // Predicated region
        $region57: #{neural_algorithm_forward.1} parent=51 // pred_check
          %p334 = pneg %p87
        $region58: #{neural_algorithm_forward.1} parent=51 // pred_check_branch
          %336 = sbr.rel (%p334) target = $region60
        $region59: #{neural_algorithm_forward.1} parent=51 // pred_region
          %337 = dma.done [#allocation5], 2304
        $region60: #{neural_algorithm_forward.1} parent=51 // pred_fallthru
          _
        // Predicated region
        $region61: #{neural_algorithm_forward.1} parent=51 // pred_check
          %p338 = pneg %p108
        $region62: #{neural_algorithm_forward.1} parent=51 // pred_check_branch
          %340 = sbr.rel (%p338) target = $region64
        $region63: #{neural_algorithm_forward.1} parent=51 // pred_region
          %341 = dma.done [#allocation5], 16
        $region64: #{neural_algorithm_forward.1} parent=51 // pred_fallthru
          _
        // Predicated region
        $region65: #{neural_algorithm_forward.1} parent=51 // pred_check
          %p342 = pneg %p129
        $region66: #{neural_algorithm_forward.1} parent=51 // pred_check_branch
          %344 = sbr.rel (%p342) target = $region68
        $region67: #{neural_algorithm_forward.1} parent=51 // pred_region
          %345 = dma.done [#allocation8], 6144
        $region68: #{neural_algorithm_forward.1} parent=51 // pred_fallthru
          _
        // Predicated region
        $region69: #{neural_algorithm_forward.1} parent=51 // pred_check
          %p346 = pneg %p171
        $region70: #{neural_algorithm_forward.1} parent=51 // pred_check_branch
          %348 = sbr.rel (%p346) target = $region72
        $region71: #{neural_algorithm_forward.1} parent=51 // pred_region
          %349 = dma.done [#allocation8], 6144
        $region72: #{neural_algorithm_forward.1} parent=51 // pred_fallthru
          _
        %s350 = sand.u32 %s32, 1
        %s351 = scalar_lea.sflag [#allocation3], %s350
        %s352 = sand.u32 %s32, 1
        %s353 = smul.addr %s352, 96
        %s354 = scalar_lea.vmem [#allocation2], %s353
        %p355 = pneg %p45
        %p356 = pneg %p42
        %p357 = pneg %p66
        %p358 = pneg %p63
        %p359 = pneg %p87
        %p360 = pneg %p84
        %p361 = pneg %p108
        %p362 = pneg %p105
        %p363 = pneg %p129
        %p364 = pneg %p126
        %p365 = pneg %p150
        %p366 = pneg %p147
        %p367 = pneg %p171
        %p368 = pneg %p168
        %p369 = pneg %p192
        %p370 = pneg %p189
        %p371 = pneg %p218
        %p372 = pneg %p215
        %s373 = smul.u32 2, %s24
        %p374 = scmp.lt.s32.totalorder %s373, 3
        %s375 = scalar_select %p374, %s373, 3
        %s376 = smul.addr %s375, 8
        %s377 = scalar_lea.vmem %s8, %s376
        %s378 = smul.u32 2, %s24
        %s379 = smul.u32 2, %s24
        %p380 = scmp.lt.s32.totalorder %s379, 3
        %s381 = scalar_select %p380, %s379, 3
        %s382 = smul.addr %s381, 8
        %s383 = scalar_lea.vmem %s8, %s382
        %s384 = smul.u32 2, %s24
        %v385 = vld [vmem:[%s329] sm:$0xff]
        %v386 = vld [vmem:[%s329 + $0x8] sm:$0xff]
        %v387 = vld [vmem:[%s329 + $0x10] sm:$0xff]
        %v388 = vld [vmem:[%s329 + $0x18] sm:$0xff]
        %v389 = vld [vmem:[%s329 + $0x20] sm:$0xff]
        %v390 = vld [vmem:[%s329 + $0x28] sm:$0xff]
        %v391 = vld [vmem:[%s329 + $0x30] sm:$0xff]
        %v392 = vld [vmem:[%s329 + $0x38] sm:$0xff]
        %v393 = vld [vmem:[%s329 + $0x40] sm:$0xff]
        %v394 = vld [vmem:[%s329 + $0x48] sm:$0xff]
        %v395 = vld [vmem:[%s329 + $0x50] sm:$0xff]
        %v396 = vld [vmem:[%s329 + $0x58] sm:$0xff]
        %401 = vrot.lane.b32.xlu0 %v387, 16
        %v402 = vpop.permute.xlu0 %401
        %403 = vrot.lane.b32.xlu0 %v388, 16
        %v404 = vpop.permute.xlu0 %403
        %405 = vrot.lane.b32.xlu0 %v393, 16
        %v406 = vpop.permute.xlu0 %405
        %407 = vrot.lane.b32.xlu0 %v394, 16
        %v408 = vpop.permute.xlu0 %407
        %417 = vrot.lane.b32.xlu0 %v389, 32
        %v418 = vpop.permute.xlu0 %417
        %419 = vrot.lane.b32.xlu0 %v390, 32
        %v420 = vpop.permute.xlu0 %419
        %421 = vrot.lane.b32.xlu0 %v395, 32
        %v422 = vpop.permute.xlu0 %421
        %423 = vrot.lane.b32.xlu0 %v396, 32
        %v424 = vpop.permute.xlu0 %423
        %vm429 = vcmask 130048
        %v430 = vsel %vm429, %v385, %v402
        %v431 = vsel %vm429, %v386, %v404
        %v432 = vsel %vm429, %v391, %v406
        %v433 = vsel %vm429, %v392, %v408
        %vm434 = vcmask 261120
        %v435 = vsel %vm434, %v430, %v418
        %v436 = vsel %vm434, %v431, %v420
        %v437 = vsel %vm434, %v432, %v422
        %v438 = vsel %vm434, %v433, %v424
        %v439 = vld [vmem:[%s1] sm:$0x1]
        %v441 = vlaneseq
        %v442 = vshrl.u32 %v441, 7
        %v443 = vsub.s32 0, %v442
        %v444 = vrot.slane %v439, %v443
        %v446 = vsub.f32 %v435, %v444
        %v447 = vsub.f32 %v436, %v444
        %v448 = vsub.f32 %v437, %v444
        %v449 = vsub.f32 %v438, %v444
        %v450 = vld [vmem:[#allocation6] sm:$0x1]
        %vm455 = vcmask 1040384
        %v456 = vrot.slane %v446, 7
        %v457 = vrot.slane %v447, 7
        %v458 = vsel %vm455, %v456, %v457
        %v459 = vrot.slane %v448, 7
        %v460 = vrot.slane %v449, 7
        %v461 = vsel %vm455, %v459, %v460
        %v464 = vsel %vm455, 0.0, %v456
        %v465 = vsel %vm455, 0.0, %v459
        %vm466 = vcmask 1046528
        %v467 = vrot.slane %v446, 1
        %v468 = vrot.slane %v447, 1
        %v469 = vsel %vm466, %v467, %v468
        %v470 = vrot.slane %v448, 1
        %v471 = vrot.slane %v449, 1
        %v472 = vsel %vm466, %v470, %v471
        %v475 = vsel %vm466, %v468, 0.0
        %v476 = vsel %vm466, %v471, 0.0
        %v477 = vld [vmem:[#allocation4] sm:$0xff]
        %v478 = vld [vmem:[#allocation4 + $0x8] sm:$0xff]
        %v479 = vld [vmem:[#allocation4 + $0x10] sm:$0xff]
        %v480 = vld [vmem:[#allocation4 + $0x18] sm:$0xff]
        %v481 = vld [vmem:[#allocation4 + $0x20] sm:$0xff]
        %v482 = vld [vmem:[#allocation4 + $0x28] sm:$0xff]
        %s483 = scalar_lea.vmem [#allocation4], 48
        %v484 = vld [vmem:[%s483] sm:$0xff]
        %v485 = vld [vmem:[%s483 + $0x8] sm:$0xff]
        %v486 = vld [vmem:[%s483 + $0x10] sm:$0xff]
        %v487 = vld [vmem:[%s483 + $0x18] sm:$0xff]
        %v488 = vld [vmem:[%s483 + $0x20] sm:$0xff]
        %v489 = vld [vmem:[%s483 + $0x28] sm:$0xff]
        %vm490 = vcmask 392192
        %v491 = vsel %vm490, %v446, 0
        %v493 = vsel %vm490, %v447, 0
        %v495 = vsel %vm490, %v448, 0
        %v497 = vsel %vm490, %v449, 0
        %499 = vmatprep.subr.mxu0 0.0
        %500 = vmatpush1.msra.mxu0 0.0
        %501 = vmatprep.subr.mxu0 0.0
        %502 = vmatpush1.msra.mxu0 0.0
        %503 = vmatprep.subr.mxu0 0.0
        %504 = vmatpush1.msra.mxu0 0.0
        %505 = vmatprep.subr.mxu0 0.0
        %506 = vmatpush1.msra.mxu0 0.0
        %507 = vmatprep.subr.mxu0 0.0
        %508 = vmatpush1.msra.mxu0 0.0
        %509 = vmatprep.subr.mxu0 0.0
        %510 = vmatpush1.msra.mxu0 0.0
        %511 = vmatprep.subr.mxu0 0.0
        %512 = vmatpush1.msra.mxu0 0.0
        %513 = vmatprep.subr.mxu0 0.0
        %514 = vmatpush1.msra.mxu0 0.0
        %515 = vmatprep.subr.mxu0 0.0
        %516 = vmatpush1.msra.mxu0 0.0
        %517 = vmatprep.subr.mxu0 0.0
        %518 = vmatpush1.msra.mxu0 0.0
        %519 = vmatprep.subr.mxu0 0.0
        %520 = vmatpush1.msra.mxu0 %v489
        %521 = vmatprep.subr.mxu0 0.0
        %522 = vmatpush1.msra.mxu0 %v488
        %523 = vmatprep.subr.mxu0 0.0
        %524 = vmatpush1.msra.mxu0 %v487
        %525 = vmatprep.subr.mxu0 0.0
        %526 = vmatpush1.msra.mxu0 %v486
        %527 = vmatprep.subr.mxu0 0.0
        %528 = vmatpush1.msra.mxu0 %v485
        %529 = vmatprep.subr.mxu0 0.0
        %530 = vmatpush1.msra.mxu0 %v484
        %531 = vmatprep.subr.mxu0 0.0
        %532 = vmatpush2.msra.mxu0 0.0
        %533 = vmatprep.subr.mxu0 0.0
        %534 = vmatpush2.msra.mxu0 0.0
        %535 = vmatprep.subr.mxu0 0.0
        %536 = vmatpush2.msra.mxu0 0.0
        %537 = vmatprep.subr.mxu0 0.0
        %538 = vmatpush2.msra.mxu0 0.0
        %539 = vmatprep.subr.mxu0 0.0
        %540 = vmatpush2.msra.mxu0 0.0
        %541 = vmatprep.subr.mxu0 0.0
        %542 = vmatpush2.msra.mxu0 0.0
        %543 = vmatprep.subr.mxu0 0.0
        %544 = vmatpush2.msra.mxu0 0.0
        %545 = vmatprep.subr.mxu0 0.0
        %546 = vmatpush2.msra.mxu0 0.0
        %547 = vmatprep.subr.mxu0 0.0
        %548 = vmatpush2.msra.mxu0 0.0
        %549 = vmatprep.subr.mxu0 0.0
        %550 = vmatpush2.msra.mxu0 0.0
        %551 = vmatprep.subr.mxu0 0.0
        %552 = vmatpush2.msra.mxu0 0.0
        %553 = vmatprep.subr.mxu0 0.0
        %554 = vmatpush2.msra.mxu0 0.0
        %555 = vmatprep.subr.mxu0 0.0
        %556 = vmatpush2.msra.mxu0 0.0
        %557 = vmatprep.subr.mxu0 0.0
        %558 = vmatpush2.msra.mxu0 0.0
        %559 = vmatprep.subr.mxu0 0.0
        %560 = vmatpush2.msra.mxu0 0.0
        %561 = vmatprep.subr.mxu0 0.0
        %562 = vmatpush2.msra.mxu0 0.0
        %563 = vmatprep.mubr.f32.mxu0 0.0
        %564 = vmatmul.mubr.f32.gmra.mxu0 %v491
        %v565 = vpop.f32.mrf.mxu0
        %v566 = vadd.f32 0.0, %v565
        %v567 = vpop.f32.mrf.mxu0
        %568 = vmatprep.mubr.f32.mxu0 0.0
        %569 = vmatmul.mubr.f32.gmra.mxu0 %v493
        %v570 = vpop.f32.mrf.mxu0
        %v571 = vadd.f32 0.0, %v570
        %v572 = vpop.f32.mrf.mxu0
        %573 = vmatprep.mubr.f32.mxu0 0.0
        %574 = vmatmul.mubr.f32.gmra.mxu0 %v495
        %v575 = vpop.f32.mrf.mxu0
        %v576 = vadd.f32 0.0, %v575
        %v577 = vpop.f32.mrf.mxu0
        %578 = vmatprep.mubr.f32.mxu0 0.0
        %579 = vmatmul.mubr.f32.gmra.mxu0 %v497
        %v580 = vpop.f32.mrf.mxu0
        %v581 = vadd.f32 0.0, %v580
        %v582 = vpop.f32.mrf.mxu0
        %583 = vdwg.mxu0
        %v585 = vsel %vm490, %v464, 0
        %v587 = vsel %vm490, %v458, 0
        %v590 = vsel %vm490, %v465, 0
        %v592 = vsel %vm490, %v461, 0
        %594 = vmatprep.subr.mxu0 0.0
        %595 = vmatpush1.msra.mxu0 0.0
        %596 = vmatprep.subr.mxu0 0.0
        %597 = vmatpush1.msra.mxu0 0.0
        %598 = vmatprep.subr.mxu0 0.0
        %599 = vmatpush1.msra.mxu0 0.0
        %600 = vmatprep.subr.mxu0 0.0
        %601 = vmatpush1.msra.mxu0 0.0
        %602 = vmatprep.subr.mxu0 0.0
        %603 = vmatpush1.msra.mxu0 0.0
        %604 = vmatprep.subr.mxu0 0.0
        %605 = vmatpush1.msra.mxu0 0.0
        %606 = vmatprep.subr.mxu0 0.0
        %607 = vmatpush1.msra.mxu0 0.0
        %608 = vmatprep.subr.mxu0 0.0
        %609 = vmatpush1.msra.mxu0 0.0
        %610 = vmatprep.subr.mxu0 0.0
        %611 = vmatpush1.msra.mxu0 0.0
        %612 = vmatprep.subr.mxu0 0.0
        %613 = vmatpush1.msra.mxu0 0.0
        %614 = vmatprep.subr.mxu0 0.0
        %615 = vmatpush1.msra.mxu0 %v482
        %616 = vmatprep.subr.mxu0 0.0
        %617 = vmatpush1.msra.mxu0 %v481
        %618 = vmatprep.subr.mxu0 0.0
        %619 = vmatpush1.msra.mxu0 %v480
        %620 = vmatprep.subr.mxu0 0.0
        %621 = vmatpush1.msra.mxu0 %v479
        %622 = vmatprep.subr.mxu0 0.0
        %623 = vmatpush1.msra.mxu0 %v478
        %624 = vmatprep.subr.mxu0 0.0
        %625 = vmatpush1.msra.mxu0 %v477
        %626 = vmatprep.subr.mxu0 0.0
        %627 = vmatpush2.msra.mxu0 0.0
        %628 = vmatprep.subr.mxu0 0.0
        %629 = vmatpush2.msra.mxu0 0.0
        %630 = vmatprep.subr.mxu0 0.0
        %631 = vmatpush2.msra.mxu0 0.0
        %632 = vmatprep.subr.mxu0 0.0
        %633 = vmatpush2.msra.mxu0 0.0
        %634 = vmatprep.subr.mxu0 0.0
        %635 = vmatpush2.msra.mxu0 0.0
        %636 = vmatprep.subr.mxu0 0.0
        %637 = vmatpush2.msra.mxu0 0.0
        %638 = vmatprep.subr.mxu0 0.0
        %639 = vmatpush2.msra.mxu0 0.0
        %640 = vmatprep.subr.mxu0 0.0
        %641 = vmatpush2.msra.mxu0 0.0
        %642 = vmatprep.subr.mxu0 0.0
        %643 = vmatpush2.msra.mxu0 0.0
        %644 = vmatprep.subr.mxu0 0.0
        %645 = vmatpush2.msra.mxu0 0.0
        %646 = vmatprep.subr.mxu0 0.0
        %647 = vmatpush2.msra.mxu0 0.0
        %648 = vmatprep.subr.mxu0 0.0
        %649 = vmatpush2.msra.mxu0 0.0
        %650 = vmatprep.subr.mxu0 0.0
        %651 = vmatpush2.msra.mxu0 0.0
        %652 = vmatprep.subr.mxu0 0.0
        %653 = vmatpush2.msra.mxu0 0.0
        %654 = vmatprep.subr.mxu0 0.0
        %655 = vmatpush2.msra.mxu0 0.0
        %656 = vmatprep.subr.mxu0 0.0
        %657 = vmatpush2.msra.mxu0 0.0
        %658 = vmatprep.mubr.f32.mxu0 0.0
        %659 = vmatmul.mubr.f32.gmra.mxu0 %v585
        %v660 = vpop.f32.mrf.mxu0
        %v661 = vadd.f32 %v566, %v660
        %v662 = vpop.f32.mrf.mxu0
        %663 = vmatprep.mubr.f32.mxu0 0.0
        %664 = vmatmul.mubr.f32.gmra.mxu0 %v587
        %v665 = vpop.f32.mrf.mxu0
        %v666 = vadd.f32 %v571, %v665
        %v667 = vpop.f32.mrf.mxu0
        %668 = vmatprep.mubr.f32.mxu0 0.0
        %669 = vmatmul.mubr.f32.gmra.mxu0 %v590
        %v670 = vpop.f32.mrf.mxu0
        %v671 = vadd.f32 %v576, %v670
        %v672 = vpop.f32.mrf.mxu0
        %673 = vmatprep.mubr.f32.mxu0 0.0
        %674 = vmatmul.mubr.f32.gmra.mxu0 %v592
        %v675 = vpop.f32.mrf.mxu0
        %v676 = vadd.f32 %v581, %v675
        %v677 = vpop.f32.mrf.mxu0
        %678 = vdwg.mxu0
        %s679 = scalar_lea.vmem [#allocation4], 96
        %v680 = vld [vmem:[%s679] sm:$0xff]
        %v681 = vld [vmem:[%s679 + $0x8] sm:$0xff]
        %v682 = vld [vmem:[%s679 + $0x10] sm:$0xff]
        %v683 = vld [vmem:[%s679 + $0x18] sm:$0xff]
        %v684 = vld [vmem:[%s679 + $0x20] sm:$0xff]
        %v685 = vld [vmem:[%s679 + $0x28] sm:$0xff]
        %v686 = vsel %vm490, %v469, 0
        %v689 = vsel %vm490, %v475, 0
        %v691 = vsel %vm490, %v472, 0
        %v694 = vsel %vm490, %v476, 0
        %696 = vmatprep.subr.mxu0 0.0
        %697 = vmatpush1.msra.mxu0 0.0
        %698 = vmatprep.subr.mxu0 0.0
        %699 = vmatpush1.msra.mxu0 0.0
        %700 = vmatprep.subr.mxu0 0.0
        %701 = vmatpush1.msra.mxu0 0.0
        %702 = vmatprep.subr.mxu0 0.0
        %703 = vmatpush1.msra.mxu0 0.0
        %704 = vmatprep.subr.mxu0 0.0
        %705 = vmatpush1.msra.mxu0 0.0
        %706 = vmatprep.subr.mxu0 0.0
        %707 = vmatpush1.msra.mxu0 0.0
        %708 = vmatprep.subr.mxu0 0.0
        %709 = vmatpush1.msra.mxu0 0.0
        %710 = vmatprep.subr.mxu0 0.0
        %711 = vmatpush1.msra.mxu0 0.0
        %712 = vmatprep.subr.mxu0 0.0
        %713 = vmatpush1.msra.mxu0 0.0
        %714 = vmatprep.subr.mxu0 0.0
        %715 = vmatpush1.msra.mxu0 0.0
        %716 = vmatprep.subr.mxu0 0.0
        %717 = vmatpush1.msra.mxu0 %v685
        %718 = vmatprep.subr.mxu0 0.0
        %719 = vmatpush1.msra.mxu0 %v684
        %720 = vmatprep.subr.mxu0 0.0
        %721 = vmatpush1.msra.mxu0 %v683
        %722 = vmatprep.subr.mxu0 0.0
        %723 = vmatpush1.msra.mxu0 %v682
        %724 = vmatprep.subr.mxu0 0.0
        %725 = vmatpush1.msra.mxu0 %v681
        %726 = vmatprep.subr.mxu0 0.0
        %727 = vmatpush1.msra.mxu0 %v680
        %728 = vmatprep.subr.mxu0 0.0
        %729 = vmatpush2.msra.mxu0 0.0
        %730 = vmatprep.subr.mxu0 0.0
        %731 = vmatpush2.msra.mxu0 0.0
        %732 = vmatprep.subr.mxu0 0.0
        %733 = vmatpush2.msra.mxu0 0.0
        %734 = vmatprep.subr.mxu0 0.0
        %735 = vmatpush2.msra.mxu0 0.0
        %736 = vmatprep.subr.mxu0 0.0
        %737 = vmatpush2.msra.mxu0 0.0
        %738 = vmatprep.subr.mxu0 0.0
        %739 = vmatpush2.msra.mxu0 0.0
        %740 = vmatprep.subr.mxu0 0.0
        %741 = vmatpush2.msra.mxu0 0.0
        %742 = vmatprep.subr.mxu0 0.0
        %743 = vmatpush2.msra.mxu0 0.0
        %744 = vmatprep.subr.mxu0 0.0
        %745 = vmatpush2.msra.mxu0 0.0
        %746 = vmatprep.subr.mxu0 0.0
        %747 = vmatpush2.msra.mxu0 0.0
        %748 = vmatprep.subr.mxu0 0.0
        %749 = vmatpush2.msra.mxu0 0.0
        %750 = vmatprep.subr.mxu0 0.0
        %751 = vmatpush2.msra.mxu0 0.0
        %752 = vmatprep.subr.mxu0 0.0
        %753 = vmatpush2.msra.mxu0 0.0
        %754 = vmatprep.subr.mxu0 0.0
        %755 = vmatpush2.msra.mxu0 0.0
        %756 = vmatprep.subr.mxu0 0.0
        %757 = vmatpush2.msra.mxu0 0.0
        %758 = vmatprep.subr.mxu0 0.0
        %759 = vmatpush2.msra.mxu0 0.0
        %760 = vmatprep.mubr.f32.mxu0 0.0
        %761 = vmatmul.mubr.f32.gmra.mxu0 %v686
        %v762 = vpop.f32.mrf.mxu0
        %v763 = vadd.f32 0.0, %v762
        %v764 = vpop.f32.mrf.mxu0
        %765 = vmatprep.mubr.f32.mxu0 0.0
        %766 = vmatmul.mubr.f32.gmra.mxu0 %v689
        %v767 = vpop.f32.mrf.mxu0
        %v768 = vadd.f32 0.0, %v767
        %v769 = vpop.f32.mrf.mxu0
        %770 = vmatprep.mubr.f32.mxu0 0.0
        %771 = vmatmul.mubr.f32.gmra.mxu0 %v691
        %v772 = vpop.f32.mrf.mxu0
        %v773 = vadd.f32 0.0, %v772
        %v774 = vpop.f32.mrf.mxu0
        %775 = vmatprep.mubr.f32.mxu0 0.0
        %776 = vmatmul.mubr.f32.gmra.mxu0 %v694
        %v777 = vpop.f32.mrf.mxu0
        %v778 = vadd.f32 0.0, %v777
        %v779 = vpop.f32.mrf.mxu0
        %780 = vdwg.mxu0
        %v781 = vadd.f32 %v661, %v763
        %v782 = vadd.f32 %v666, %v768
        %v783 = vadd.f32 %v671, %v773
        %v784 = vadd.f32 %v676, %v778
        %v786 = vlaneseq
        %v787 = vshrl.u32 %v786, 7
        %v788 = vsub.s32 0, %v787
        %v789 = vrot.slane %v450, %v788
        %v791 = vadd.f32 %v781, %v789
        %v792 = vadd.f32 %v782, %v789
        %v793 = vadd.f32 %v783, %v789
        %v794 = vadd.f32 %v784, %v789
        %v795 = vmax.f32 %v791, 0.0
        %v796 = vmax.f32 %v792, 0.0
        %v797 = vmax.f32 %v793, 0.0
        %v798 = vmax.f32 %v794, 0.0
        %v799 = vld [vmem:[%s5] sm:$0x1]
        %v804 = vrot.slane %v795, 7
        %v805 = vrot.slane %v796, 7
        %v806 = vsel %vm455, %v804, %v805
        %v807 = vrot.slane %v797, 7
        %v808 = vrot.slane %v798, 7
        %v809 = vsel %vm455, %v807, %v808
        %v814 = vsel %vm455, 0.0, %v804
        %v815 = vsel %vm455, 0.0, %v807
        %v816 = vrot.slane %v795, 1
        %v817 = vrot.slane %v796, 1
        %v818 = vsel %vm466, %v816, %v817
        %v819 = vrot.slane %v797, 1
        %v820 = vrot.slane %v798, 1
        %v821 = vsel %vm466, %v819, %v820
        %v826 = vsel %vm466, %v817, 0.0
        %v827 = vsel %vm466, %v820, 0.0
        %v828 = vld [vmem:[#allocation7] sm:$0xff]
        %v829 = vld [vmem:[#allocation7 + $0x8] sm:$0xff]
        %v830 = vld [vmem:[#allocation7 + $0x10] sm:$0xff]
        %v831 = vld [vmem:[#allocation7 + $0x18] sm:$0xff]
        %v832 = vld [vmem:[#allocation7 + $0x20] sm:$0xff]
        %v833 = vld [vmem:[#allocation7 + $0x28] sm:$0xff]
        %v834 = vld [vmem:[#allocation7 + $0x30] sm:$0xff]
        %v835 = vld [vmem:[#allocation7 + $0x38] sm:$0xff]
        %v836 = vld [vmem:[#allocation7 + $0x40] sm:$0xff]
        %v837 = vld [vmem:[#allocation7 + $0x48] sm:$0xff]
        %v838 = vld [vmem:[#allocation7 + $0x50] sm:$0xff]
        %v839 = vld [vmem:[#allocation7 + $0x58] sm:$0xff]
        %v840 = vld [vmem:[#allocation7 + $0x60] sm:$0xff]
        %v841 = vld [vmem:[#allocation7 + $0x68] sm:$0xff]
        %v842 = vld [vmem:[#allocation7 + $0x70] sm:$0xff]
        %v843 = vld [vmem:[#allocation7 + $0x78] sm:$0xff]
        %s844 = scalar_lea.vmem [#allocation7], 128
        %v845 = vld [vmem:[%s844] sm:$0xff]
        %v846 = vld [vmem:[%s844 + $0x8] sm:$0xff]
        %v847 = vld [vmem:[%s844 + $0x10] sm:$0xff]
        %v848 = vld [vmem:[%s844 + $0x18] sm:$0xff]
        %v849 = vld [vmem:[%s844 + $0x20] sm:$0xff]
        %v850 = vld [vmem:[%s844 + $0x28] sm:$0xff]
        %v851 = vld [vmem:[%s844 + $0x30] sm:$0xff]
        %v852 = vld [vmem:[%s844 + $0x38] sm:$0xff]
        %v853 = vld [vmem:[%s844 + $0x40] sm:$0xff]
        %v854 = vld [vmem:[%s844 + $0x48] sm:$0xff]
        %v855 = vld [vmem:[%s844 + $0x50] sm:$0xff]
        %v856 = vld [vmem:[%s844 + $0x58] sm:$0xff]
        %v857 = vld [vmem:[%s844 + $0x60] sm:$0xff]
        %v858 = vld [vmem:[%s844 + $0x68] sm:$0xff]
        %v859 = vld [vmem:[%s844 + $0x70] sm:$0xff]
        %v860 = vld [vmem:[%s844 + $0x78] sm:$0xff]
        %861 = vmatprep.subr.mxu0 0.0
        %862 = vmatpush1.msra.mxu0 %v860
        %863 = vmatprep.subr.mxu0 0.0
        %864 = vmatpush1.msra.mxu0 %v859
        %865 = vmatprep.subr.mxu0 0.0
        %866 = vmatpush1.msra.mxu0 %v858
        %867 = vmatprep.subr.mxu0 0.0
        %868 = vmatpush1.msra.mxu0 %v857
        %869 = vmatprep.subr.mxu0 0.0
        %870 = vmatpush1.msra.mxu0 %v856
        %871 = vmatprep.subr.mxu0 0.0
        %872 = vmatpush1.msra.mxu0 %v855
        %873 = vmatprep.subr.mxu0 0.0
        %874 = vmatpush1.msra.mxu0 %v854
        %875 = vmatprep.subr.mxu0 0.0
        %876 = vmatpush1.msra.mxu0 %v853
        %877 = vmatprep.subr.mxu0 0.0
        %878 = vmatpush1.msra.mxu0 %v852
        %879 = vmatprep.subr.mxu0 0.0
        %880 = vmatpush1.msra.mxu0 %v851
        %881 = vmatprep.subr.mxu0 0.0
        %882 = vmatpush1.msra.mxu0 %v850
        %883 = vmatprep.subr.mxu0 0.0
        %884 = vmatpush1.msra.mxu0 %v849
        %885 = vmatprep.subr.mxu0 0.0
        %886 = vmatpush1.msra.mxu0 %v848
        %887 = vmatprep.subr.mxu0 0.0
        %888 = vmatpush1.msra.mxu0 %v847
        %889 = vmatprep.subr.mxu0 0.0
        %890 = vmatpush1.msra.mxu0 %v846
        %891 = vmatprep.subr.mxu0 0.0
        %892 = vmatpush1.msra.mxu0 %v845
        %893 = vmatprep.subr.mxu0 0.0
        %894 = vmatpush2.msra.mxu0 0.0
        %895 = vmatprep.subr.mxu0 0.0
        %896 = vmatpush2.msra.mxu0 0.0
        %897 = vmatprep.subr.mxu0 0.0
        %898 = vmatpush2.msra.mxu0 0.0
        %899 = vmatprep.subr.mxu0 0.0
        %900 = vmatpush2.msra.mxu0 0.0
        %901 = vmatprep.subr.mxu0 0.0
        %902 = vmatpush2.msra.mxu0 0.0
        %903 = vmatprep.subr.mxu0 0.0
        %904 = vmatpush2.msra.mxu0 0.0
        %905 = vmatprep.subr.mxu0 0.0
        %906 = vmatpush2.msra.mxu0 0.0
        %907 = vmatprep.subr.mxu0 0.0
        %908 = vmatpush2.msra.mxu0 0.0
        %909 = vmatprep.subr.mxu0 0.0
        %910 = vmatpush2.msra.mxu0 0.0
        %911 = vmatprep.subr.mxu0 0.0
        %912 = vmatpush2.msra.mxu0 0.0
        %913 = vmatprep.subr.mxu0 0.0
        %914 = vmatpush2.msra.mxu0 0.0
        %915 = vmatprep.subr.mxu0 0.0
        %916 = vmatpush2.msra.mxu0 0.0
        %917 = vmatprep.subr.mxu0 0.0
        %918 = vmatpush2.msra.mxu0 0.0
        %919 = vmatprep.subr.mxu0 0.0
        %920 = vmatpush2.msra.mxu0 0.0
        %921 = vmatprep.subr.mxu0 0.0
        %922 = vmatpush2.msra.mxu0 0.0
        %923 = vmatprep.subr.mxu0 0.0
        %924 = vmatpush2.msra.mxu0 0.0
        %925 = vmatprep.mubr.f32.mxu0 0.0
        %926 = vmatmul.mubr.f32.gmra.mxu0 %v795
        %v927 = vpop.f32.mrf.mxu0
        %v928 = vadd.f32 0.0, %v927
        %v929 = vpop.f32.mrf.mxu0
        %930 = vmatprep.mubr.f32.mxu0 0.0
        %931 = vmatmul.mubr.f32.gmra.mxu0 %v796
        %v932 = vpop.f32.mrf.mxu0
        %v933 = vadd.f32 0.0, %v932
        %v934 = vpop.f32.mrf.mxu0
        %935 = vmatprep.mubr.f32.mxu0 0.0
        %936 = vmatmul.mubr.f32.gmra.mxu0 %v797
        %v937 = vpop.f32.mrf.mxu0
        %v938 = vadd.f32 0.0, %v937
        %v939 = vpop.f32.mrf.mxu0
        %940 = vmatprep.mubr.f32.mxu0 0.0
        %941 = vmatmul.mubr.f32.gmra.mxu0 %v798
        %v942 = vpop.f32.mrf.mxu0
        %v943 = vadd.f32 0.0, %v942
        %v944 = vpop.f32.mrf.mxu0
        %945 = vdwg.mxu0
        %946 = vmatprep.subr.mxu0 0.0
        %947 = vmatpush1.msra.mxu0 %v843
        %948 = vmatprep.subr.mxu0 0.0
        %949 = vmatpush1.msra.mxu0 %v842
        %950 = vmatprep.subr.mxu0 0.0
        %951 = vmatpush1.msra.mxu0 %v841
        %952 = vmatprep.subr.mxu0 0.0
        %953 = vmatpush1.msra.mxu0 %v840
        %954 = vmatprep.subr.mxu0 0.0
        %955 = vmatpush1.msra.mxu0 %v839
        %956 = vmatprep.subr.mxu0 0.0
        %957 = vmatpush1.msra.mxu0 %v838
        %958 = vmatprep.subr.mxu0 0.0
        %959 = vmatpush1.msra.mxu0 %v837
        %960 = vmatprep.subr.mxu0 0.0
        %961 = vmatpush1.msra.mxu0 %v836
        %962 = vmatprep.subr.mxu0 0.0
        %963 = vmatpush1.msra.mxu0 %v835
        %964 = vmatprep.subr.mxu0 0.0
        %965 = vmatpush1.msra.mxu0 %v834
        %966 = vmatprep.subr.mxu0 0.0
        %967 = vmatpush1.msra.mxu0 %v833
        %968 = vmatprep.subr.mxu0 0.0
        %969 = vmatpush1.msra.mxu0 %v832
        %970 = vmatprep.subr.mxu0 0.0
        %971 = vmatpush1.msra.mxu0 %v831
        %972 = vmatprep.subr.mxu0 0.0
        %973 = vmatpush1.msra.mxu0 %v830
        %974 = vmatprep.subr.mxu0 0.0
        %975 = vmatpush1.msra.mxu0 %v829
        %976 = vmatprep.subr.mxu0 0.0
        %977 = vmatpush1.msra.mxu0 %v828
        %978 = vmatprep.subr.mxu0 0.0
        %979 = vmatpush2.msra.mxu0 0.0
        %980 = vmatprep.subr.mxu0 0.0
        %981 = vmatpush2.msra.mxu0 0.0
        %982 = vmatprep.subr.mxu0 0.0
        %983 = vmatpush2.msra.mxu0 0.0
        %984 = vmatprep.subr.mxu0 0.0
        %985 = vmatpush2.msra.mxu0 0.0
        %986 = vmatprep.subr.mxu0 0.0
        %987 = vmatpush2.msra.mxu0 0.0
        %988 = vmatprep.subr.mxu0 0.0
        %989 = vmatpush2.msra.mxu0 0.0
        %990 = vmatprep.subr.mxu0 0.0
        %991 = vmatpush2.msra.mxu0 0.0
        %992 = vmatprep.subr.mxu0 0.0
        %993 = vmatpush2.msra.mxu0 0.0
        %994 = vmatprep.subr.mxu0 0.0
        %995 = vmatpush2.msra.mxu0 0.0
        %996 = vmatprep.subr.mxu0 0.0
        %997 = vmatpush2.msra.mxu0 0.0
        %998 = vmatprep.subr.mxu0 0.0
        %999 = vmatpush2.msra.mxu0 0.0
        %1000 = vmatprep.subr.mxu0 0.0
        %1001 = vmatpush2.msra.mxu0 0.0
        %1002 = vmatprep.subr.mxu0 0.0
        %1003 = vmatpush2.msra.mxu0 0.0
        %1004 = vmatprep.subr.mxu0 0.0
        %1005 = vmatpush2.msra.mxu0 0.0
        %1006 = vmatprep.subr.mxu0 0.0
        %1007 = vmatpush2.msra.mxu0 0.0
        %1008 = vmatprep.subr.mxu0 0.0
        %1009 = vmatpush2.msra.mxu0 0.0
        %1010 = vmatprep.mubr.f32.mxu0 0.0
        %1011 = vmatmul.mubr.f32.gmra.mxu0 %v814
        %v1012 = vpop.f32.mrf.mxu0
        %v1013 = vadd.f32 %v928, %v1012
        %v1014 = vpop.f32.mrf.mxu0
        %1015 = vmatprep.mubr.f32.mxu0 0.0
        %1016 = vmatmul.mubr.f32.gmra.mxu0 %v806
        %v1017 = vpop.f32.mrf.mxu0
        %v1018 = vadd.f32 %v933, %v1017
        %v1019 = vpop.f32.mrf.mxu0
        %1020 = vmatprep.mubr.f32.mxu0 0.0
        %1021 = vmatmul.mubr.f32.gmra.mxu0 %v815
        %v1022 = vpop.f32.mrf.mxu0
        %v1023 = vadd.f32 %v938, %v1022
        %v1024 = vpop.f32.mrf.mxu0
        %1025 = vmatprep.mubr.f32.mxu0 0.0
        %1026 = vmatmul.mubr.f32.gmra.mxu0 %v809
        %v1027 = vpop.f32.mrf.mxu0
        %v1028 = vadd.f32 %v943, %v1027
        %v1029 = vpop.f32.mrf.mxu0
        %1030 = vdwg.mxu0
        %s1031 = scalar_lea.vmem [#allocation7], 256
        %v1032 = vld [vmem:[%s1031] sm:$0xff]
        %v1033 = vld [vmem:[%s1031 + $0x8] sm:$0xff]
        %v1034 = vld [vmem:[%s1031 + $0x10] sm:$0xff]
        %v1035 = vld [vmem:[%s1031 + $0x18] sm:$0xff]
        %v1036 = vld [vmem:[%s1031 + $0x20] sm:$0xff]
        %v1037 = vld [vmem:[%s1031 + $0x28] sm:$0xff]
        %v1038 = vld [vmem:[%s1031 + $0x30] sm:$0xff]
        %v1039 = vld [vmem:[%s1031 + $0x38] sm:$0xff]
        %v1040 = vld [vmem:[%s1031 + $0x40] sm:$0xff]
        %v1041 = vld [vmem:[%s1031 + $0x48] sm:$0xff]
        %v1042 = vld [vmem:[%s1031 + $0x50] sm:$0xff]
        %v1043 = vld [vmem:[%s1031 + $0x58] sm:$0xff]
        %v1044 = vld [vmem:[%s1031 + $0x60] sm:$0xff]
        %v1045 = vld [vmem:[%s1031 + $0x68] sm:$0xff]
        %v1046 = vld [vmem:[%s1031 + $0x70] sm:$0xff]
        %v1047 = vld [vmem:[%s1031 + $0x78] sm:$0xff]
        %1048 = vmatprep.subr.mxu0 0.0
        %1049 = vmatpush1.msra.mxu0 %v1047
        %1050 = vmatprep.subr.mxu0 0.0
        %1051 = vmatpush1.msra.mxu0 %v1046
        %1052 = vmatprep.subr.mxu0 0.0
        %1053 = vmatpush1.msra.mxu0 %v1045
        %1054 = vmatprep.subr.mxu0 0.0
        %1055 = vmatpush1.msra.mxu0 %v1044
        %1056 = vmatprep.subr.mxu0 0.0
        %1057 = vmatpush1.msra.mxu0 %v1043
        %1058 = vmatprep.subr.mxu0 0.0
        %1059 = vmatpush1.msra.mxu0 %v1042
        %1060 = vmatprep.subr.mxu0 0.0
        %1061 = vmatpush1.msra.mxu0 %v1041
        %1062 = vmatprep.subr.mxu0 0.0
        %1063 = vmatpush1.msra.mxu0 %v1040
        %1064 = vmatprep.subr.mxu0 0.0
        %1065 = vmatpush1.msra.mxu0 %v1039
        %1066 = vmatprep.subr.mxu0 0.0
        %1067 = vmatpush1.msra.mxu0 %v1038
        %1068 = vmatprep.subr.mxu0 0.0
        %1069 = vmatpush1.msra.mxu0 %v1037
        %1070 = vmatprep.subr.mxu0 0.0
        %1071 = vmatpush1.msra.mxu0 %v1036
        %1072 = vmatprep.subr.mxu0 0.0
        %1073 = vmatpush1.msra.mxu0 %v1035
        %1074 = vmatprep.subr.mxu0 0.0
        %1075 = vmatpush1.msra.mxu0 %v1034
        %1076 = vmatprep.subr.mxu0 0.0
        %1077 = vmatpush1.msra.mxu0 %v1033
        %1078 = vmatprep.subr.mxu0 0.0
        %1079 = vmatpush1.msra.mxu0 %v1032
        %1080 = vmatprep.subr.mxu0 0.0
        %1081 = vmatpush2.msra.mxu0 0.0
        %1082 = vmatprep.subr.mxu0 0.0
        %1083 = vmatpush2.msra.mxu0 0.0
        %1084 = vmatprep.subr.mxu0 0.0
        %1085 = vmatpush2.msra.mxu0 0.0
        %1086 = vmatprep.subr.mxu0 0.0
        %1087 = vmatpush2.msra.mxu0 0.0
        %1088 = vmatprep.subr.mxu0 0.0
        %1089 = vmatpush2.msra.mxu0 0.0
        %1090 = vmatprep.subr.mxu0 0.0
        %1091 = vmatpush2.msra.mxu0 0.0
        %1092 = vmatprep.subr.mxu0 0.0
        %1093 = vmatpush2.msra.mxu0 0.0
        %1094 = vmatprep.subr.mxu0 0.0
        %1095 = vmatpush2.msra.mxu0 0.0
        %1096 = vmatprep.subr.mxu0 0.0
        %1097 = vmatpush2.msra.mxu0 0.0
        %1098 = vmatprep.subr.mxu0 0.0
        %1099 = vmatpush2.msra.mxu0 0.0
        %1100 = vmatprep.subr.mxu0 0.0
        %1101 = vmatpush2.msra.mxu0 0.0
        %1102 = vmatprep.subr.mxu0 0.0
        %1103 = vmatpush2.msra.mxu0 0.0
        %1104 = vmatprep.subr.mxu0 0.0
        %1105 = vmatpush2.msra.mxu0 0.0
        %1106 = vmatprep.subr.mxu0 0.0
        %1107 = vmatpush2.msra.mxu0 0.0
        %1108 = vmatprep.subr.mxu0 0.0
        %1109 = vmatpush2.msra.mxu0 0.0
        %1110 = vmatprep.subr.mxu0 0.0
        %1111 = vmatpush2.msra.mxu0 0.0
        %1112 = vmatprep.mubr.f32.mxu0 0.0
        %1113 = vmatmul.mubr.f32.gmra.mxu0 %v818
        %v1114 = vpop.f32.mrf.mxu0
        %v1115 = vadd.f32 0.0, %v1114
        %v1116 = vpop.f32.mrf.mxu0
        %1117 = vmatprep.mubr.f32.mxu0 0.0
        %1118 = vmatmul.mubr.f32.gmra.mxu0 %v826
        %v1119 = vpop.f32.mrf.mxu0
        %v1120 = vadd.f32 0.0, %v1119
        %v1121 = vpop.f32.mrf.mxu0
        %1122 = vmatprep.mubr.f32.mxu0 0.0
        %1123 = vmatmul.mubr.f32.gmra.mxu0 %v821
        %v1124 = vpop.f32.mrf.mxu0
        %v1125 = vadd.f32 0.0, %v1124
        %v1126 = vpop.f32.mrf.mxu0
        %1127 = vmatprep.mubr.f32.mxu0 0.0
        %1128 = vmatmul.mubr.f32.gmra.mxu0 %v827
        %v1129 = vpop.f32.mrf.mxu0
        %v1130 = vadd.f32 0.0, %v1129
        %v1131 = vpop.f32.mrf.mxu0
        %1132 = vdwg.mxu0
        %v1133 = vadd.f32 %v1013, %v1115
        %v1134 = vadd.f32 %v1018, %v1120
        %v1135 = vadd.f32 %v1023, %v1125
        %v1136 = vadd.f32 %v1028, %v1130
        %v1138 = vlaneseq
        %v1139 = vshrl.u32 %v1138, 7
        %v1140 = vsub.s32 0, %v1139
        %v1141 = vrot.slane %v799, %v1140
        %v1143 = vadd.f32 %v1133, %v1141
        %v1144 = vadd.f32 %v1134, %v1141
        %v1145 = vadd.f32 %v1135, %v1141
        %v1146 = vadd.f32 %v1136, %v1141
        %v1147 = vmax.f32 %v1143, 0.0
        %v1148 = vmax.f32 %v1144, 0.0
        %v1149 = vmax.f32 %v1145, 0.0
        %v1150 = vmax.f32 %v1146, 0.0
        %v1155 = vcombine.high %v1147, %v1147
        %v1157 = vunpack.c.l.s4 1983009808
        %v1158 = vunpack.c.0.s8 %v1157
        %v1159 = vlaneseq
        %v1160 = vshrl.u32 %v1159, 7
        %v1161 = vsub.s32 %v1158, %v1160
        %v1162 = vrot.slane %v1147, %v1161
        %v1164 = vunpack.c.l.s4 1983009808
        %v1165 = vunpack.c.0.s8 %v1164
        %v1166 = vlaneseq
        %v1167 = vshrl.u32 %v1166, 7
        %v1168 = vsub.s32 %v1165, %v1167
        %v1169 = vrot.slane %v1155, %v1168
        %v1170 = vcombine.high %v1162, %v1162
        %v1171 = vcombine.high %v1169, %v1169
        %v1172 = vcombine.high %v1148, %v1148
        %v1174 = vunpack.c.l.s4 1983009808
        %v1175 = vunpack.c.0.s8 %v1174
        %v1176 = vlaneseq
        %v1177 = vshrl.u32 %v1176, 7
        %v1178 = vsub.s32 %v1175, %v1177
        %v1179 = vrot.slane %v1148, %v1178
        %v1181 = vunpack.c.l.s4 1983009808
        %v1182 = vunpack.c.0.s8 %v1181
        %v1183 = vlaneseq
        %v1184 = vshrl.u32 %v1183, 7
        %v1185 = vsub.s32 %v1182, %v1184
        %v1186 = vrot.slane %v1172, %v1185
        %v1187 = vcombine.high %v1179, %v1179
        %v1188 = vcombine.high %v1186, %v1186
        %v1189 = vcombine.high %v1149, %v1149
        %v1191 = vunpack.c.l.s4 1983009808
        %v1192 = vunpack.c.0.s8 %v1191
        %v1193 = vlaneseq
        %v1194 = vshrl.u32 %v1193, 7
        %v1195 = vsub.s32 %v1192, %v1194
        %v1196 = vrot.slane %v1149, %v1195
        %v1198 = vunpack.c.l.s4 1983009808
        %v1199 = vunpack.c.0.s8 %v1198
        %v1200 = vlaneseq
        %v1201 = vshrl.u32 %v1200, 7
        %v1202 = vsub.s32 %v1199, %v1201
        %v1203 = vrot.slane %v1189, %v1202
        %v1204 = vcombine.high %v1196, %v1196
        %v1205 = vcombine.high %v1203, %v1203
        %v1206 = vcombine.high %v1150, %v1150
        %v1208 = vunpack.c.l.s4 1983009808
        %v1209 = vunpack.c.0.s8 %v1208
        %v1210 = vlaneseq
        %v1211 = vshrl.u32 %v1210, 7
        %v1212 = vsub.s32 %v1209, %v1211
        %v1213 = vrot.slane %v1150, %v1212
        %v1215 = vunpack.c.l.s4 1983009808
        %v1216 = vunpack.c.0.s8 %v1215
        %v1217 = vlaneseq
        %v1218 = vshrl.u32 %v1217, 7
        %v1219 = vsub.s32 %v1216, %v1218
        %v1220 = vrot.slane %v1206, %v1219
        %v1221 = vcombine.high %v1213, %v1213
        %v1222 = vcombine.high %v1220, %v1220
        %v1239 = vrot.slane %v1162, 7
        %v1240 = vrot.slane %v1239, 2
        %v1241 = vrot.slane %v1170, 7
        %v1242 = vrot.slane %v1241, 2
        %v1243 = vrot.slane %v1169, 7
        %v1244 = vrot.slane %v1243, 2
        %v1245 = vrot.slane %v1171, 7
        %v1246 = vrot.slane %v1245, 2
        %v1247 = vrot.slane %v1179, 7
        %v1248 = vrot.slane %v1247, 2
        %v1249 = vrot.slane %v1187, 7
        %v1250 = vrot.slane %v1249, 2
        %v1251 = vrot.slane %v1186, 7
        %v1252 = vrot.slane %v1251, 2
        %v1253 = vrot.slane %v1188, 7
        %v1254 = vrot.slane %v1253, 2
        %v1255 = vrot.slane %v1196, 7
        %v1256 = vrot.slane %v1255, 2
        %v1257 = vrot.slane %v1204, 7
        %v1258 = vrot.slane %v1257, 2
        %v1259 = vrot.slane %v1203, 7
        %v1260 = vrot.slane %v1259, 2
        %v1261 = vrot.slane %v1205, 7
        %v1262 = vrot.slane %v1261, 2
        %v1263 = vrot.slane %v1213, 7
        %v1264 = vrot.slane %v1263, 2
        %v1265 = vrot.slane %v1221, 7
        %v1266 = vrot.slane %v1265, 2
        %v1267 = vrot.slane %v1220, 7
        %v1268 = vrot.slane %v1267, 2
        %v1269 = vrot.slane %v1222, 7
        %v1270 = vrot.slane %v1269, 2
        %v1287 = vmax.f32 %v1162, %v1240
        %v1288 = vmax.f32 %v1170, %v1242
        %v1289 = vmax.f32 %v1169, %v1244
        %v1290 = vmax.f32 %v1171, %v1246
        %v1291 = vmax.f32 %v1179, %v1248
        %v1292 = vmax.f32 %v1187, %v1250
        %v1293 = vmax.f32 %v1186, %v1252
        %v1294 = vmax.f32 %v1188, %v1254
        %v1295 = vmax.f32 %v1196, %v1256
        %v1296 = vmax.f32 %v1204, %v1258
        %v1297 = vmax.f32 %v1203, %v1260
        %v1298 = vmax.f32 %v1205, %v1262
        %v1299 = vmax.f32 %v1213, %v1264
        %v1300 = vmax.f32 %v1221, %v1266
        %v1301 = vmax.f32 %v1220, %v1268
        %v1302 = vmax.f32 %v1222, %v1270
        %v1319 = vlaneseq
        %v1320 = vshrl.u32 %v1319, 7
        %v1321 = vsub.s32 0, %v1320
        %v1322 = vrot.slane %v1287, %v1321
        %v1323 = vlaneseq
        %v1324 = vshrl.u32 %v1323, 7
        %v1325 = vsub.s32 0, %v1324
        %v1326 = vrot.slane %v1288, %v1325
        %v1327 = vlaneseq
        %v1328 = vshrl.u32 %v1327, 7
        %v1329 = vsub.s32 0, %v1328
        %v1330 = vrot.slane %v1289, %v1329
        %v1331 = vlaneseq
        %v1332 = vshrl.u32 %v1331, 7
        %v1333 = vsub.s32 0, %v1332
        %v1334 = vrot.slane %v1290, %v1333
        %v1335 = vlaneseq
        %v1336 = vshrl.u32 %v1335, 7
        %v1337 = vsub.s32 0, %v1336
        %v1338 = vrot.slane %v1291, %v1337
        %v1339 = vlaneseq
        %v1340 = vshrl.u32 %v1339, 7
        %v1341 = vsub.s32 0, %v1340
        %v1342 = vrot.slane %v1292, %v1341
        %v1343 = vlaneseq
        %v1344 = vshrl.u32 %v1343, 7
        %v1345 = vsub.s32 0, %v1344
        %v1346 = vrot.slane %v1293, %v1345
        %v1347 = vlaneseq
        %v1348 = vshrl.u32 %v1347, 7
        %v1349 = vsub.s32 0, %v1348
        %v1350 = vrot.slane %v1294, %v1349
        %v1351 = vlaneseq
        %v1352 = vshrl.u32 %v1351, 7
        %v1353 = vsub.s32 0, %v1352
        %v1354 = vrot.slane %v1295, %v1353
        %v1355 = vlaneseq
        %v1356 = vshrl.u32 %v1355, 7
        %v1357 = vsub.s32 0, %v1356
        %v1358 = vrot.slane %v1296, %v1357
        %v1359 = vlaneseq
        %v1360 = vshrl.u32 %v1359, 7
        %v1361 = vsub.s32 0, %v1360
        %v1362 = vrot.slane %v1297, %v1361
        %v1363 = vlaneseq
        %v1364 = vshrl.u32 %v1363, 7
        %v1365 = vsub.s32 0, %v1364
        %v1366 = vrot.slane %v1298, %v1365
        %v1367 = vlaneseq
        %v1368 = vshrl.u32 %v1367, 7
        %v1369 = vsub.s32 0, %v1368
        %v1370 = vrot.slane %v1299, %v1369
        %v1371 = vlaneseq
        %v1372 = vshrl.u32 %v1371, 7
        %v1373 = vsub.s32 0, %v1372
        %v1374 = vrot.slane %v1300, %v1373
        %v1375 = vlaneseq
        %v1376 = vshrl.u32 %v1375, 7
        %v1377 = vsub.s32 0, %v1376
        %v1378 = vrot.slane %v1301, %v1377
        %v1379 = vlaneseq
        %v1380 = vshrl.u32 %v1379, 7
        %v1381 = vsub.s32 0, %v1380
        %v1382 = vrot.slane %v1302, %v1381
        %vm1383 = vcmask 1041409
        %v1384 = vsel %vm1383, %v1326, %v1322
        %vm1385 = vcmask 1042434
        %v1386 = vsel %vm1385, %v1330, %v1384
        %vm1387 = vcmask 1043459
        %v1388 = vsel %vm1387, %v1334, %v1386
        %vm1389 = vcmask 1044484
        %v1390 = vsel %vm1389, %v1338, %v1388
        %vm1391 = vcmask 1045509
        %v1392 = vsel %vm1391, %v1342, %v1390
        %vm1393 = vcmask 1046534
        %v1394 = vsel %vm1393, %v1346, %v1392
        %vm1395 = vcmask 1047559
        %v1396 = vsel %vm1395, %v1350, %v1394
        %v1397 = vsel %vm1383, %v1358, %v1354
        %v1398 = vsel %vm1385, %v1362, %v1397
        %v1399 = vsel %vm1387, %v1366, %v1398
        %v1400 = vsel %vm1389, %v1370, %v1399
        %v1401 = vsel %vm1391, %v1374, %v1400
        %v1402 = vsel %vm1393, %v1378, %v1401
        %v1403 = vsel %vm1395, %v1382, %v1402
        %1404 = vrot.lane.b32.xlu0 %v1396, 127
        %v1405 = vpop.permute.xlu0 %1404
        %1406 = vrot.lane.b32.xlu0 %v1403, 127
        %v1407 = vpop.permute.xlu0 %1406
        %v1412 = vcombine.high %v1405, %v1405
        %v1414 = vunpack.c.l.s4 1983009808
        %v1415 = vunpack.c.0.s8 %v1414
        %v1416 = vlaneseq
        %v1417 = vshrl.u32 %v1416, 7
        %v1418 = vsub.s32 %v1415, %v1417
        %v1419 = vrot.slane %v1405, %v1418
        %v1421 = vunpack.c.l.s4 1983009808
        %v1422 = vunpack.c.0.s8 %v1421
        %v1423 = vlaneseq
        %v1424 = vshrl.u32 %v1423, 7
        %v1425 = vsub.s32 %v1422, %v1424
        %v1426 = vrot.slane %v1412, %v1425
        %v1427 = vcombine.high %v1419, %v1419
        %v1428 = vcombine.high %v1426, %v1426
        %v1429 = vcombine.high %v1407, %v1407
        %v1431 = vunpack.c.l.s4 1983009808
        %v1432 = vunpack.c.0.s8 %v1431
        %v1433 = vlaneseq
        %v1434 = vshrl.u32 %v1433, 7
        %v1435 = vsub.s32 %v1432, %v1434
        %v1436 = vrot.slane %v1407, %v1435
        %v1438 = vunpack.c.l.s4 1983009808
        %v1439 = vunpack.c.0.s8 %v1438
        %v1440 = vlaneseq
        %v1441 = vshrl.u32 %v1440, 7
        %v1442 = vsub.s32 %v1439, %v1441
        %v1443 = vrot.slane %v1429, %v1442
        %v1444 = vcombine.high %v1436, %v1436
        %v1445 = vcombine.high %v1443, %v1443
        %v1446 = vrot.slane %v1419, 1
        %v1447 = vrot.slane %v1427, 1
        %v1448 = vrot.slane %v1426, 1
        %v1449 = vrot.slane %v1428, 1
        %v1450 = vrot.slane %v1436, 1
        %v1451 = vrot.slane %v1444, 1
        %v1452 = vrot.slane %v1443, 1
        %v1453 = vrot.slane %v1445, 1
        %v1470 = vmax.f32 %v1287, %v1419
        %v1471 = vmax.f32 %v1288, %v1446
        %v1472 = vmax.f32 %v1289, %v1427
        %v1473 = vmax.f32 %v1290, %v1447
        %v1474 = vmax.f32 %v1291, %v1426
        %v1475 = vmax.f32 %v1292, %v1448
        %v1476 = vmax.f32 %v1293, %v1428
        %v1477 = vmax.f32 %v1294, %v1449
        %v1478 = vmax.f32 %v1295, %v1436
        %v1479 = vmax.f32 %v1296, %v1450
        %v1480 = vmax.f32 %v1297, %v1444
        %v1481 = vmax.f32 %v1298, %v1451
        %v1482 = vmax.f32 %v1299, %v1443
        %v1483 = vmax.f32 %v1300, %v1452
        %v1484 = vmax.f32 %v1301, %v1445
        %v1485 = vmax.f32 %v1302, %v1453
        %v1486 = vld [vmem:[%s7] sm:$0x1]
        %v1501 = vlaneseq
        %v1502 = vshrl.u32 %v1501, 7
        %v1503 = vsub.s32 0, %v1502
        %v1504 = vrot.slane %v1470, %v1503
        %v1505 = vlaneseq
        %v1506 = vshrl.u32 %v1505, 7
        %v1507 = vsub.s32 0, %v1506
        %v1508 = vrot.slane %v1471, %v1507
        %v1509 = vlaneseq
        %v1510 = vshrl.u32 %v1509, 7
        %v1511 = vsub.s32 0, %v1510
        %v1512 = vrot.slane %v1472, %v1511
        %v1513 = vlaneseq
        %v1514 = vshrl.u32 %v1513, 7
        %v1515 = vsub.s32 0, %v1514
        %v1516 = vrot.slane %v1473, %v1515
        %v1517 = vlaneseq
        %v1518 = vshrl.u32 %v1517, 7
        %v1519 = vsub.s32 0, %v1518
        %v1520 = vrot.slane %v1474, %v1519
        %v1521 = vlaneseq
        %v1522 = vshrl.u32 %v1521, 7
        %v1523 = vsub.s32 0, %v1522
        %v1524 = vrot.slane %v1475, %v1523
        %v1525 = vlaneseq
        %v1526 = vshrl.u32 %v1525, 7
        %v1527 = vsub.s32 0, %v1526
        %v1528 = vrot.slane %v1476, %v1527
        %v1529 = vlaneseq
        %v1530 = vshrl.u32 %v1529, 7
        %v1531 = vsub.s32 0, %v1530
        %v1532 = vrot.slane %v1478, %v1531
        %v1533 = vlaneseq
        %v1534 = vshrl.u32 %v1533, 7
        %v1535 = vsub.s32 0, %v1534
        %v1536 = vrot.slane %v1479, %v1535
        %v1537 = vlaneseq
        %v1538 = vshrl.u32 %v1537, 7
        %v1539 = vsub.s32 0, %v1538
        %v1540 = vrot.slane %v1480, %v1539
        %v1541 = vlaneseq
        %v1542 = vshrl.u32 %v1541, 7
        %v1543 = vsub.s32 0, %v1542
        %v1544 = vrot.slane %v1481, %v1543
        %v1545 = vlaneseq
        %v1546 = vshrl.u32 %v1545, 7
        %v1547 = vsub.s32 0, %v1546
        %v1548 = vrot.slane %v1482, %v1547
        %v1549 = vlaneseq
        %v1550 = vshrl.u32 %v1549, 7
        %v1551 = vsub.s32 0, %v1550
        %v1552 = vrot.slane %v1483, %v1551
        %v1553 = vlaneseq
        %v1554 = vshrl.u32 %v1553, 7
        %v1555 = vsub.s32 0, %v1554
        %v1556 = vrot.slane %v1484, %v1555
        %v1557 = vsel %vm1385, %v1508, %v1504
        %v1558 = vsel %vm1387, %v1512, %v1557
        %v1559 = vsel %vm1389, %v1516, %v1558
        %v1560 = vsel %vm1391, %v1520, %v1559
        %v1561 = vsel %vm1393, %v1524, %v1560
        %v1562 = vsel %vm1395, %v1528, %v1561
        %v1563 = vsel %vm1385, %v1536, %v1532
        %v1564 = vsel %vm1387, %v1540, %v1563
        %v1565 = vsel %vm1389, %v1544, %v1564
        %v1566 = vsel %vm1391, %v1548, %v1565
        %v1567 = vsel %vm1393, %v1552, %v1566
        %v1568 = vsel %vm1395, %v1556, %v1567
        %v1571 = vsel %vm455, 0.0, %v1562
        %v1572 = vsel %vm455, 0.0, %v1568
        %v1575 = vlaneseq
        %v1576 = vshrl.u32 %v1575, 7
        %v1577 = vsub.s32 0, %v1576
        %v1578 = vrot.slane %v1477, %v1577
        %v1579 = vlaneseq
        %v1580 = vshrl.u32 %v1579, 7
        %v1581 = vsub.s32 0, %v1580
        %v1582 = vrot.slane %v1485, %v1581
        %v1583 = vsel %vm1383, %v1512, %v1508
        %v1584 = vsel %vm1385, %v1516, %v1583
        %v1585 = vsel %vm1387, %v1520, %v1584
        %v1586 = vsel %vm1389, %v1524, %v1585
        %v1587 = vsel %vm1391, %v1528, %v1586
        %v1588 = vsel %vm1393, %v1578, %v1587
        %v1589 = vsel %vm1383, %v1540, %v1536
        %v1590 = vsel %vm1385, %v1544, %v1589
        %v1591 = vsel %vm1387, %v1548, %v1590
        %v1592 = vsel %vm1389, %v1552, %v1591
        %v1593 = vsel %vm1391, %v1556, %v1592
        %v1594 = vsel %vm1393, %v1582, %v1593
        %v1597 = vsel %vm466, %v1588, 0.0
        %v1598 = vsel %vm466, %v1594, 0.0
        %v1599 = vld [vmem:[#allocation9] sm:$0xff]
        %v1600 = vld [vmem:[#allocation9 + $0x8] sm:$0xff]
        %v1601 = vld [vmem:[#allocation9 + $0x10] sm:$0xff]
        %v1602 = vld [vmem:[#allocation9 + $0x18] sm:$0xff]
        %v1603 = vld [vmem:[#allocation9 + $0x20] sm:$0xff]
        %v1604 = vld [vmem:[#allocation9 + $0x28] sm:$0xff]
        %v1605 = vld [vmem:[#allocation9 + $0x30] sm:$0xff]
        %v1606 = vld [vmem:[#allocation9 + $0x38] sm:$0xff]
        %v1607 = vld [vmem:[#allocation9 + $0x40] sm:$0xff]
        %v1608 = vld [vmem:[#allocation9 + $0x48] sm:$0xff]
        %v1609 = vld [vmem:[#allocation9 + $0x50] sm:$0xff]
        %v1610 = vld [vmem:[#allocation9 + $0x58] sm:$0xff]
        %v1611 = vld [vmem:[#allocation9 + $0x60] sm:$0xff]
        %v1612 = vld [vmem:[#allocation9 + $0x68] sm:$0xff]
        %v1613 = vld [vmem:[#allocation9 + $0x70] sm:$0xff]
        %v1614 = vld [vmem:[#allocation9 + $0x78] sm:$0xff]
        %s1615 = scalar_lea.vmem [#allocation9], 128
        %v1616 = vld [vmem:[%s1615] sm:$0xff]
        %v1617 = vld [vmem:[%s1615 + $0x8] sm:$0xff]
        %v1618 = vld [vmem:[%s1615 + $0x10] sm:$0xff]
        %v1619 = vld [vmem:[%s1615 + $0x18] sm:$0xff]
        %v1620 = vld [vmem:[%s1615 + $0x20] sm:$0xff]
        %v1621 = vld [vmem:[%s1615 + $0x28] sm:$0xff]
        %v1622 = vld [vmem:[%s1615 + $0x30] sm:$0xff]
        %v1623 = vld [vmem:[%s1615 + $0x38] sm:$0xff]
        %v1624 = vld [vmem:[%s1615 + $0x40] sm:$0xff]
        %v1625 = vld [vmem:[%s1615 + $0x48] sm:$0xff]
        %v1626 = vld [vmem:[%s1615 + $0x50] sm:$0xff]
        %v1627 = vld [vmem:[%s1615 + $0x58] sm:$0xff]
        %v1628 = vld [vmem:[%s1615 + $0x60] sm:$0xff]
        %v1629 = vld [vmem:[%s1615 + $0x68] sm:$0xff]
        %v1630 = vld [vmem:[%s1615 + $0x70] sm:$0xff]
        %v1631 = vld [vmem:[%s1615 + $0x78] sm:$0xff]
        %v1632 = vsel %vm1383, %v1508, %v1504
        %v1633 = vsel %vm1385, %v1512, %v1632
        %v1634 = vsel %vm1387, %v1516, %v1633
        %v1635 = vsel %vm1389, %v1520, %v1634
        %v1636 = vsel %vm1391, %v1524, %v1635
        %v1637 = vsel %vm1393, %v1528, %v1636
        %v1638 = vsel %vm1395, %v1578, %v1637
        %v1639 = vsel %vm1383, %v1536, %v1532
        %v1640 = vsel %vm1385, %v1540, %v1639
        %v1641 = vsel %vm1387, %v1544, %v1640
        %v1642 = vsel %vm1389, %v1548, %v1641
        %v1643 = vsel %vm1391, %v1552, %v1642
        %v1644 = vsel %vm1393, %v1556, %v1643
        %v1645 = vsel %vm1395, %v1582, %v1644
        %1648 = vmatprep.subr.mxu0 0.0
        %1649 = vmatpush1.msra.mxu0 %v1631
        %1650 = vmatprep.subr.mxu0 0.0
        %1651 = vmatpush1.msra.mxu0 %v1630
        %1652 = vmatprep.subr.mxu0 0.0
        %1653 = vmatpush1.msra.mxu0 %v1629
        %1654 = vmatprep.subr.mxu0 0.0
        %1655 = vmatpush1.msra.mxu0 %v1628
        %1656 = vmatprep.subr.mxu0 0.0
        %1657 = vmatpush1.msra.mxu0 %v1627
        %1658 = vmatprep.subr.mxu0 0.0
        %1659 = vmatpush1.msra.mxu0 %v1626
        %1660 = vmatprep.subr.mxu0 0.0
        %1661 = vmatpush1.msra.mxu0 %v1625
        %1662 = vmatprep.subr.mxu0 0.0
        %1663 = vmatpush1.msra.mxu0 %v1624
        %1664 = vmatprep.subr.mxu0 0.0
        %1665 = vmatpush1.msra.mxu0 %v1623
        %1666 = vmatprep.subr.mxu0 0.0
        %1667 = vmatpush1.msra.mxu0 %v1622
        %1668 = vmatprep.subr.mxu0 0.0
        %1669 = vmatpush1.msra.mxu0 %v1621
        %1670 = vmatprep.subr.mxu0 0.0
        %1671 = vmatpush1.msra.mxu0 %v1620
        %1672 = vmatprep.subr.mxu0 0.0
        %1673 = vmatpush1.msra.mxu0 %v1619
        %1674 = vmatprep.subr.mxu0 0.0
        %1675 = vmatpush1.msra.mxu0 %v1618
        %1676 = vmatprep.subr.mxu0 0.0
        %1677 = vmatpush1.msra.mxu0 %v1617
        %1678 = vmatprep.subr.mxu0 0.0
        %1679 = vmatpush1.msra.mxu0 %v1616
        %1680 = vmatprep.subr.mxu0 0.0
        %1681 = vmatpush2.msra.mxu0 0.0
        %1682 = vmatprep.subr.mxu0 0.0
        %1683 = vmatpush2.msra.mxu0 0.0
        %1684 = vmatprep.subr.mxu0 0.0
        %1685 = vmatpush2.msra.mxu0 0.0
        %1686 = vmatprep.subr.mxu0 0.0
        %1687 = vmatpush2.msra.mxu0 0.0
        %1688 = vmatprep.subr.mxu0 0.0
        %1689 = vmatpush2.msra.mxu0 0.0
        %1690 = vmatprep.subr.mxu0 0.0
        %1691 = vmatpush2.msra.mxu0 0.0
        %1692 = vmatprep.subr.mxu0 0.0
        %1693 = vmatpush2.msra.mxu0 0.0
        %1694 = vmatprep.subr.mxu0 0.0
        %1695 = vmatpush2.msra.mxu0 0.0
        %1696 = vmatprep.subr.mxu0 0.0
        %1697 = vmatpush2.msra.mxu0 0.0
        %1698 = vmatprep.subr.mxu0 0.0
        %1699 = vmatpush2.msra.mxu0 0.0
        %1700 = vmatprep.subr.mxu0 0.0
        %1701 = vmatpush2.msra.mxu0 0.0
        %1702 = vmatprep.subr.mxu0 0.0
        %1703 = vmatpush2.msra.mxu0 0.0
        %1704 = vmatprep.subr.mxu0 0.0
        %1705 = vmatpush2.msra.mxu0 0.0
        %1706 = vmatprep.subr.mxu0 0.0
        %1707 = vmatpush2.msra.mxu0 0.0
        %1708 = vmatprep.subr.mxu0 0.0
        %1709 = vmatpush2.msra.mxu0 0.0
        %1710 = vmatprep.subr.mxu0 0.0
        %1711 = vmatpush2.msra.mxu0 0.0
        %1712 = vmatprep.mubr.f32.mxu0 0.0
        %1713 = vmatmul.mubr.f32.gmra.mxu0 %v1638
        %v1714 = vpop.f32.mrf.mxu0
        %v1715 = vadd.f32 0.0, %v1714
        %v1716 = vpop.f32.mrf.mxu0
        %1717 = vmatprep.mubr.f32.mxu0 0.0
        %1718 = vmatmul.mubr.f32.gmra.mxu0 %v1645
        %v1719 = vpop.f32.mrf.mxu0
        %v1720 = vadd.f32 0.0, %v1719
        %v1721 = vpop.f32.mrf.mxu0
        %1722 = vdwg.mxu0
        %1723 = vmatprep.subr.mxu0 0.0
        %1724 = vmatpush1.msra.mxu0 %v1614
        %1725 = vmatprep.subr.mxu0 0.0
        %1726 = vmatpush1.msra.mxu0 %v1613
        %1727 = vmatprep.subr.mxu0 0.0
        %1728 = vmatpush1.msra.mxu0 %v1612
        %1729 = vmatprep.subr.mxu0 0.0
        %1730 = vmatpush1.msra.mxu0 %v1611
        %1731 = vmatprep.subr.mxu0 0.0
        %1732 = vmatpush1.msra.mxu0 %v1610
        %1733 = vmatprep.subr.mxu0 0.0
        %1734 = vmatpush1.msra.mxu0 %v1609
        %1735 = vmatprep.subr.mxu0 0.0
        %1736 = vmatpush1.msra.mxu0 %v1608
        %1737 = vmatprep.subr.mxu0 0.0
        %1738 = vmatpush1.msra.mxu0 %v1607
        %1739 = vmatprep.subr.mxu0 0.0
        %1740 = vmatpush1.msra.mxu0 %v1606
        %1741 = vmatprep.subr.mxu0 0.0
        %1742 = vmatpush1.msra.mxu0 %v1605
        %1743 = vmatprep.subr.mxu0 0.0
        %1744 = vmatpush1.msra.mxu0 %v1604
        %1745 = vmatprep.subr.mxu0 0.0
        %1746 = vmatpush1.msra.mxu0 %v1603
        %1747 = vmatprep.subr.mxu0 0.0
        %1748 = vmatpush1.msra.mxu0 %v1602
        %1749 = vmatprep.subr.mxu0 0.0
        %1750 = vmatpush1.msra.mxu0 %v1601
        %1751 = vmatprep.subr.mxu0 0.0
        %1752 = vmatpush1.msra.mxu0 %v1600
        %1753 = vmatprep.subr.mxu0 0.0
        %1754 = vmatpush1.msra.mxu0 %v1599
        %1755 = vmatprep.subr.mxu0 0.0
        %1756 = vmatpush2.msra.mxu0 0.0
        %1757 = vmatprep.subr.mxu0 0.0
        %1758 = vmatpush2.msra.mxu0 0.0
        %1759 = vmatprep.subr.mxu0 0.0
        %1760 = vmatpush2.msra.mxu0 0.0
        %1761 = vmatprep.subr.mxu0 0.0
        %1762 = vmatpush2.msra.mxu0 0.0
        %1763 = vmatprep.subr.mxu0 0.0
        %1764 = vmatpush2.msra.mxu0 0.0
        %1765 = vmatprep.subr.mxu0 0.0
        %1766 = vmatpush2.msra.mxu0 0.0
        %1767 = vmatprep.subr.mxu0 0.0
        %1768 = vmatpush2.msra.mxu0 0.0
        %1769 = vmatprep.subr.mxu0 0.0
        %1770 = vmatpush2.msra.mxu0 0.0
        %1771 = vmatprep.subr.mxu0 0.0
        %1772 = vmatpush2.msra.mxu0 0.0
        %1773 = vmatprep.subr.mxu0 0.0
        %1774 = vmatpush2.msra.mxu0 0.0
        %1775 = vmatprep.subr.mxu0 0.0
        %1776 = vmatpush2.msra.mxu0 0.0
        %1777 = vmatprep.subr.mxu0 0.0
        %1778 = vmatpush2.msra.mxu0 0.0
        %1779 = vmatprep.subr.mxu0 0.0
        %1780 = vmatpush2.msra.mxu0 0.0
        %1781 = vmatprep.subr.mxu0 0.0
        %1782 = vmatpush2.msra.mxu0 0.0
        %1783 = vmatprep.subr.mxu0 0.0
        %1784 = vmatpush2.msra.mxu0 0.0
        %1785 = vmatprep.subr.mxu0 0.0
        %1786 = vmatpush2.msra.mxu0 0.0
        %1787 = vmatprep.mubr.f32.mxu0 0.0
        %1788 = vmatmul.mubr.f32.gmra.mxu0 %v1571
        %v1789 = vpop.f32.mrf.mxu0
        %v1790 = vadd.f32 %v1715, %v1789
        %v1791 = vpop.f32.mrf.mxu0
        %1792 = vmatprep.mubr.f32.mxu0 0.0
        %1793 = vmatmul.mubr.f32.gmra.mxu0 %v1572
        %v1794 = vpop.f32.mrf.mxu0
        %v1795 = vadd.f32 %v1720, %v1794
        %v1796 = vpop.f32.mrf.mxu0
        %1797 = vdwg.mxu0
        %s1798 = scalar_lea.vmem [#allocation9], 256
        %v1799 = vld [vmem:[%s1798] sm:$0xff]
        %v1800 = vld [vmem:[%s1798 + $0x8] sm:$0xff]
        %v1801 = vld [vmem:[%s1798 + $0x10] sm:$0xff]
        %v1802 = vld [vmem:[%s1798 + $0x18] sm:$0xff]
        %v1803 = vld [vmem:[%s1798 + $0x20] sm:$0xff]
        %v1804 = vld [vmem:[%s1798 + $0x28] sm:$0xff]
        %v1805 = vld [vmem:[%s1798 + $0x30] sm:$0xff]
        %v1806 = vld [vmem:[%s1798 + $0x38] sm:$0xff]
        %v1807 = vld [vmem:[%s1798 + $0x40] sm:$0xff]
        %v1808 = vld [vmem:[%s1798 + $0x48] sm:$0xff]
        %v1809 = vld [vmem:[%s1798 + $0x50] sm:$0xff]
        %v1810 = vld [vmem:[%s1798 + $0x58] sm:$0xff]
        %v1811 = vld [vmem:[%s1798 + $0x60] sm:$0xff]
        %v1812 = vld [vmem:[%s1798 + $0x68] sm:$0xff]
        %v1813 = vld [vmem:[%s1798 + $0x70] sm:$0xff]
        %v1814 = vld [vmem:[%s1798 + $0x78] sm:$0xff]
        %1815 = vmatprep.subr.mxu0 0.0
        %1816 = vmatpush1.msra.mxu0 %v1814
        %1817 = vmatprep.subr.mxu0 0.0
        %1818 = vmatpush1.msra.mxu0 %v1813
        %1819 = vmatprep.subr.mxu0 0.0
        %1820 = vmatpush1.msra.mxu0 %v1812
        %1821 = vmatprep.subr.mxu0 0.0
        %1822 = vmatpush1.msra.mxu0 %v1811
        %1823 = vmatprep.subr.mxu0 0.0
        %1824 = vmatpush1.msra.mxu0 %v1810
        %1825 = vmatprep.subr.mxu0 0.0
        %1826 = vmatpush1.msra.mxu0 %v1809
        %1827 = vmatprep.subr.mxu0 0.0
        %1828 = vmatpush1.msra.mxu0 %v1808
        %1829 = vmatprep.subr.mxu0 0.0
        %1830 = vmatpush1.msra.mxu0 %v1807
        %1831 = vmatprep.subr.mxu0 0.0
        %1832 = vmatpush1.msra.mxu0 %v1806
        %1833 = vmatprep.subr.mxu0 0.0
        %1834 = vmatpush1.msra.mxu0 %v1805
        %1835 = vmatprep.subr.mxu0 0.0
        %1836 = vmatpush1.msra.mxu0 %v1804
        %1837 = vmatprep.subr.mxu0 0.0
        %1838 = vmatpush1.msra.mxu0 %v1803
        %1839 = vmatprep.subr.mxu0 0.0
        %1840 = vmatpush1.msra.mxu0 %v1802
        %1841 = vmatprep.subr.mxu0 0.0
        %1842 = vmatpush1.msra.mxu0 %v1801
        %1843 = vmatprep.subr.mxu0 0.0
        %1844 = vmatpush1.msra.mxu0 %v1800
        %1845 = vmatprep.subr.mxu0 0.0
        %1846 = vmatpush1.msra.mxu0 %v1799
        %1847 = vmatprep.subr.mxu0 0.0
        %1848 = vmatpush2.msra.mxu0 0.0
        %1849 = vmatprep.subr.mxu0 0.0
        %1850 = vmatpush2.msra.mxu0 0.0
        %1851 = vmatprep.subr.mxu0 0.0
        %1852 = vmatpush2.msra.mxu0 0.0
        %1853 = vmatprep.subr.mxu0 0.0
        %1854 = vmatpush2.msra.mxu0 0.0
        %1855 = vmatprep.subr.mxu0 0.0
        %1856 = vmatpush2.msra.mxu0 0.0
        %1857 = vmatprep.subr.mxu0 0.0
        %1858 = vmatpush2.msra.mxu0 0.0
        %1859 = vmatprep.subr.mxu0 0.0
        %1860 = vmatpush2.msra.mxu0 0.0
        %1861 = vmatprep.subr.mxu0 0.0
        %1862 = vmatpush2.msra.mxu0 0.0
        %1863 = vmatprep.subr.mxu0 0.0
        %1864 = vmatpush2.msra.mxu0 0.0
        %1865 = vmatprep.subr.mxu0 0.0
        %1866 = vmatpush2.msra.mxu0 0.0
        %1867 = vmatprep.subr.mxu0 0.0
        %1868 = vmatpush2.msra.mxu0 0.0
        %1869 = vmatprep.subr.mxu0 0.0
        %1870 = vmatpush2.msra.mxu0 0.0
        %1871 = vmatprep.subr.mxu0 0.0
        %1872 = vmatpush2.msra.mxu0 0.0
        %1873 = vmatprep.subr.mxu0 0.0
        %1874 = vmatpush2.msra.mxu0 0.0
        %1875 = vmatprep.subr.mxu0 0.0
        %1876 = vmatpush2.msra.mxu0 0.0
        %1877 = vmatprep.subr.mxu0 0.0
        %1878 = vmatpush2.msra.mxu0 0.0
        %1879 = vmatprep.mubr.f32.mxu0 0.0
        %1880 = vmatmul.mubr.f32.gmra.mxu0 %v1597
        %v1881 = vpop.f32.mrf.mxu0
        %v1882 = vadd.f32 0.0, %v1881
        %v1883 = vpop.f32.mrf.mxu0
        %1884 = vmatprep.mubr.f32.mxu0 0.0
        %1885 = vmatmul.mubr.f32.gmra.mxu0 %v1598
        %v1886 = vpop.f32.mrf.mxu0
        %v1887 = vadd.f32 0.0, %v1886
        %v1888 = vpop.f32.mrf.mxu0
        %1889 = vdwg.mxu0
        %v1890 = vadd.f32 %v1790, %v1882
        %v1891 = vadd.f32 %v1795, %v1887
        %v1893 = vlaneseq
        %v1894 = vshrl.u32 %v1893, 7
        %v1895 = vsub.s32 0, %v1894
        %v1896 = vrot.slane %v1486, %v1895
        %v1898 = vadd.f32 %v1890, %v1896
        %v1899 = vadd.f32 %v1891, %v1896
        %1900 = vst [vmem:[%s383] sm:$0xff] %v1898
        %1901 = vst [vmem:[%s383 + $0x8] sm:$0xff] %v1899
        %s1902 = smul.u32 2, %s24
        %p1903 = scmp.lt.s32.totalorder %s1902, 3
        %s1904 = scalar_select %p1903, %s1902, 3
        %s1905 = smul.addr %s1904, 8
        %s1906 = scalar_lea.vmem %s8, %s1905
        // Predicated region
        $region73: #{neural_algorithm_forward.1} parent=51 // pred_check
          %p1907 = pneg %p215
        $region74: #{neural_algorithm_forward.1} parent=51 // pred_check_branch
          %1909 = sbr.rel (%p1907) target = $region76
        $region75: #{neural_algorithm_forward.1} parent=51 // pred_region
          %s1910 = smul.u32 2, %s24
        $region76: #{neural_algorithm_forward.1} parent=51 // pred_fallthru
          _
      $region52: #{neural_algorithm_forward.1} parent=5 // pred_fallthru
        _
      %p1911 = scmp.le.s32.totalorder 2, %s19
      // Predicated region
      $region77: #{neural_algorithm_forward.1} parent=5 // pred_check
        %p1912 = pneg %p1911
      $region78: #{neural_algorithm_forward.1} parent=5 // pred_check_branch
        %1914 = sbr.rel (%p1912) target = $region80
      $region79: #{neural_algorithm_forward.1} parent=5 // pred_region
        %s1915 = ssub.s32 %s19, 2
        // Predicated region
        $region81: #{neural_algorithm_forward.1} parent=79 // pred_check
          %p1916 = pneg %p221
        $region82: #{neural_algorithm_forward.1} parent=79 // pred_check_branch
          %1918 = sbr.rel (%p1916) target = $region84
        $region83: #{neural_algorithm_forward.1} parent=79 // pred_region
          %s1919 = smul.u32 2, %s25
          %p1920 = scmp.lt.s32.totalorder %s1919, 3
          %s1921 = scalar_select %p1920, %s1919, 3
          %s1922 = smul.addr %s1921, 8
          %s1923 = scalar_lea.vmem %s8, %s1922
        $region84: #{neural_algorithm_forward.1} parent=79 // pred_fallthru
          _
      $region80: #{neural_algorithm_forward.1} parent=5 // pred_fallthru
        _
    $region6: #{neural_algorithm_forward.1} parent=1 // loop_footer
      %s23 = sadd.s32 1, %s19
    $region7: #{neural_algorithm_forward.1} parent=1 // loop_footer_branch
      %18 = sbr.rel target = $region3
    $region8: #{neural_algorithm_forward.1} parent=1 // loop_exit
      _
    %1924 = vsyncpa [#allocation3], 1
    %s1925 = scalar_lea.sflag [#allocation3], 1
    %1926 = vsyncpa %s1925, 1
    %1927 = vsyncpa [#allocation5], 1
    %1928 = vsyncpa [#allocation8], 1

</llo_original>
